<compile_context>
chip_gen: v7x
topology: tpu7x:2x2x1
jax: 0.10.0
libtpu: 0.0.40
codegen_flags: <defaults>
</compile_context>

<pallas_src>
import jax
import jax.numpy as jnp
from jax import lax
from jax.experimental import pallas as pl
from jax.experimental.pallas import tpu as pltpu


_VMEM_LIMIT_BYTES = 64 * 1024 * 1024  # raise the scoped VMEM limit (v5e default is 16 MiB)


# ----------------------------------------------------------------------------
# Shared LSTM cell math (used inside kernels and in the references).
# ----------------------------------------------------------------------------
def _lstm_cell(gates, c_prev, H):
    i = jax.nn.sigmoid(gates[:, 0:H])
    f = jax.nn.sigmoid(gates[:, H:2 * H])
    g = jnp.tanh(gates[:, 2 * H:3 * H])
    o = jax.nn.sigmoid(gates[:, 3 * H:4 * H])
    c_new = f * c_prev + i * g
    h_new = o * jnp.tanh(c_new)
    return h_new, c_new


# ----------------------------------------------------------------------------
# Fused per-layer kernel factory.
#   first: layer input is the raw (TC, B, Din) chunk (passed twice: fwd + bwd chunk)
#          otherwise it is the previous layer's direction-major bf16 activations
#          (act_f, act_b), each passed twice (fwd chunk and reversed chunk).
#   last : fuse the final Linear on out[:, -1, :]; no activation outputs.
# ----------------------------------------------------------------------------
def _make_layer_kernel(first: bool, last: bool):
    n_act = 2 if first else 4

    def kernel(*args):
        act = args[:n_act]
        rest = args[n_act:]
        if last:
            (wih_ref, b_ref, whh_ref, fcw_ref, fcb_ref,
             o_ref, xgf_sc, xgb_sc, h_sc, c_sc, hb1_sc) = rest
        else:
            (wih_ref, b_ref, whh_ref,
             outf_ref, outb_ref, xgf_sc, xgb_sc, h_sc, c_sc) = rest

        act_fwd = act[0:1] if first else act[0:2]   # chunk k (forward time order)
        act_bwd = act[1:2] if first else act[2:4]   # chunk nc-1-k (for the backward dir)

        TC, B = act_fwd[0].shape[0], act_fwd[0].shape[1]
        H = whh_ref.shape[1]
        G4 = 4 * H
        k = pl.program_id(0)
        nc = pl.num_programs(0)

        @pl.when(k == 0)
        def _():
            h_sc[...] = jnp.zeros_like(h_sc)
            c_sc[...] = jnp.zeros_like(c_sc)

        # ---- hoisted per-chunk input projection (MXU-friendly, off the serial path) ----
        def proj(refs, d):
            if first:
                x2 = refs[0][...].reshape(TC * B, -1).astype(jnp.bfloat16)
                acc = jnp.dot(x2, wih_ref[d], preferred_element_type=jnp.float32)
            else:
                xf2 = refs[0][...].reshape(TC * B, -1)   # bf16 already
                xb2 = refs[1][...].reshape(TC * B, -1)
                acc = (jnp.dot(xf2, wih_ref[d, 0], preferred_element_type=jnp.float32)
                       + jnp.dot(xb2, wih_ref[d, 1], preferred_element_type=jnp.float32))
            return (acc + b_ref[d]).reshape(TC, B, G4)

        xgf_sc[...] = proj(act_fwd, 0)   # forward-direction gate pre-activations
        xgb_sc[...] = proj(act_bwd, 1)   # backward-direction gate pre-activations

        w_f = whh_ref[0]
        w_b = whh_ref[1]

        # ---- recurrence over the chunk; state lives in vreg carries ----
        def step(s, carry):
            hf, hb, cf, cb = carry
            tb = TC - 1 - s
            rec_f = jnp.dot(hf.astype(jnp.bfloat16), w_f,
                            preferred_element_type=jnp.float32)
            rec_b = jnp.dot(hb.astype(jnp.bfloat16), w_b,
                            preferred_element_type=jnp.float32)
            gates_f = xgf_sc[s] + rec_f
            gates_b = xgb_sc[tb] + rec_b
            hf_n, cf_n = _lstm_cell(gates_f, cf, H)
            hb_n, cb_n = _lstm_cell(gates_b, cb, H)
            if last:
                # Backward hidden at original time T-1 is produced at the very first step.
                @pl.when((k == 0) & (s == 0))
                def _():
                    hb1_sc[...] = hb_n
            else:
                outf_ref[s] = hf_n.astype(outf_ref.dtype)
                outb_ref[tb] = hb_n.astype(outb_ref.dtype)
            return hf_n, hb_n, cf_n, cb_n

        carry0 = (h_sc[0], h_sc[1], c_sc[0], c_sc[1])
        # TC <= time_chunk, so this is a bounded unroll even for long sequences.
        hf, hb, cf, cb = lax.fori_loop(0, TC, step, carry0, unroll=True)
        h_sc[0] = hf
        h_sc[1] = hb
        c_sc[0] = cf
        c_sc[1] = cb

        if last:
            @pl.when(k == nc - 1)
            def _():
                o_ref[...] = (
                    jnp.dot(hf.astype(jnp.bfloat16), fcw_ref[0],
                            preferred_element_type=jnp.float32)
                    + jnp.dot(hb1_sc[...].astype(jnp.bfloat16), fcw_ref[1],
                              preferred_element_type=jnp.float32)
                    + fcb_ref[...]).astype(o_ref.dtype)

    return kernel


def _pick_chunk(T, target):
    tc = max(1, min(T, target))
    while T % tc:
        tc -= 1
    return tc


def _full_spec(arr):
    nd = arr.ndim
    return pl.BlockSpec(arr.shape, lambda k, _nd=nd: (0,) * _nd)


# ----------------------------------------------------------------------------
# Forward pass (matches RNN.forward: bi-LSTM with zero init state + fc on out[:, -1, :])
# ----------------------------------------------------------------------------
def rnn_forward(x_btd, params, num_layers, time_chunk=8):
    B, T, _ = x_btd.shape
    Bp = ((B + 7) // 8) * 8                  # pad batch to full f32 sublane groups
    if Bp != B:
        x_btd = jnp.pad(x_btd, ((0, Bp - B), (0, 0), (0, 0)))
    x_tbd = jnp.transpose(x_btd, (1, 0, 2))  # (T, Bp, Din), time-major

    TC = _pick_chunk(T, time_chunk)
    nc = T // TC

    act_f = act_b = None
    logits = None
    for l in range(num_layers):
        p = params["layers"][l]
        first = (l == 0)
        last = (l == num_layers - 1)
        H = p["whh_stack"].shape[1]

        fwd_map = lambda k: (k, 0, 0)
        bwd_map = lambda k, _nc=nc: (_nc - 1 - k, 0, 0)

        if first:
            blk = (TC, Bp, x_tbd.shape[2])
            act_in = [x_tbd, x_tbd]
            act_specs = [pl.BlockSpec(blk, fwd_map), pl.BlockSpec(blk, bwd_map)]
        else:
            blk = (TC, Bp, H)
            act_in = [act_f, act_b, act_f, act_b]
            act_specs = [pl.BlockSpec(blk, fwd_map), pl.BlockSpec(blk, fwd_map),
                         pl.BlockSpec(blk, bwd_map), pl.BlockSpec(blk, bwd_map)]

        w_in = [p["wih_pack"], p["b_pack"], p["whh_stack"]]
        if last:
            w_in += [params["fc_w_split"], params["fc_b"]]
        w_specs = [_full_spec(w) for w in w_in]

        if last:
            C = params["fc_b"].shape[1]
            out_shape = jax.ShapeDtypeStruct((Bp, C), jnp.float32)
            out_specs = pl.BlockSpec((Bp, C), lambda k: (0, 0))
        else:
            # Direction-major bf16 activations: contiguous H-wide stores, half the HBM traffic.
            out_shape = (jax.ShapeDtypeStruct((T, Bp, H), jnp.bfloat16),
                         jax.ShapeDtypeStruct((T, Bp, H), jnp.bfloat16))
            out_specs = (pl.BlockSpec((TC, Bp, H), fwd_map),
                         pl.BlockSpec((TC, Bp, H), bwd_map))

        scratch = [pltpu.VMEM((TC, Bp, 4 * H), jnp.float32),   # fwd gate pre-acts (chunk)
                   pltpu.VMEM((TC, Bp, 4 * H), jnp.float32),   # bwd gate pre-acts (chunk)
                   pltpu.VMEM((2, Bp, H), jnp.float32),        # h state (fwd, bwd)
                   pltpu.VMEM((2, Bp, H), jnp.float32)]        # c state (fwd, bwd)
        if last:
            scratch.append(pltpu.VMEM((Bp, H), jnp.float32))   # h_bwd(T-1) for the fc

        res = pl.pallas_call(
            _make_layer_kernel(first, last),
            out_shape=out_shape,
            grid=(nc,),
            in_specs=act_specs + w_specs,
            out_specs=out_specs,
            scratch_shapes=scratch,
            compiler_params=pltpu.CompilerParams(
                dimension_semantics=("arbitrary",),
                vmem_limit_bytes=_VMEM_LIMIT_BYTES),
        )(*act_in, *w_in)

        if last:
            logits = res
        else:
            act_f, act_b = res
    return logits[:B]


# ----------------------------------------------------------------------------
# References
# ----------------------------------------------------------------------------
def _lstm_dir_ref(x_tbd, wih_t, whh_t, b2d):
    T, B, _ = x_tbd.shape
    H = whh_t.shape[0]
    h = jnp.zeros((B, H), jnp.float32)
    c = jnp.zeros((B, H), jnp.float32)
    outs = []
    for t in range(T):
        gates = x_tbd[t] @ wih_t + h @ whh_t + b2d
        h, c = _lstm_cell(gates, c, H)
        outs.append(h)
    return jnp.stack(outs)


def rnn_forward_ref_f32(x_btd, params, num_layers):
    """Independent pure-f32 reference (per-direction loops + reverse + concat + fc)."""
    inp = jnp.transpose(x_btd, (1, 0, 2))
    for l in range(num_layers):
        p = params["layers"][l]
        out_f = _lstm_dir_ref(inp, p["wih_f_t"], p["whh_f_t"], p["b_f"])
        out_b = _lstm_dir_ref(inp[::-1], p["wih_b_t"], p["whh_b_t"], p["b_b"])[::-1]
        inp = jnp.concatenate([out_f, out_b], axis=-1)
    return inp[-1] @ params["fc_w_t"] + params["fc_b"]


def rnn_forward_ref_matched(x_btd, params, num_layers):
    """Reference mirroring the kernel's bf16-operand / f32-accumulate math and bf16
    inter-layer activations."""
    bf = jnp.bfloat16
    B, T, _ = x_btd.shape
    x_tbd = jnp.transpose(x_btd, (1, 0, 2))
    prev_f = prev_b = None
    logits = None
    for l in range(num_layers):
        p = params["layers"][l]
        H = p["whh_stack"].shape[1]
        G4 = 4 * H
        if l == 0:
            x2 = x_tbd.reshape(T * B, -1).astype(bf)
            xg_f = jnp.dot(x2, p["wih_pack"][0], preferred_element_type=jnp.float32) + p["b_pack"][0]
            xg_b = jnp.dot(x2, p["wih_pack"][1], preferred_element_type=jnp.float32) + p["b_pack"][1]
        else:
            f2 = prev_f.reshape(T * B, -1)
            b2 = prev_b.reshape(T * B, -1)
            xg_f = (jnp.dot(f2, p["wih_pack"][0, 0], preferred_element_type=jnp.float32)
                    + jnp.dot(b2, p["wih_pack"][0, 1], preferred_element_type=jnp.float32)
                    + p["b_pack"][0])
            xg_b = (jnp.dot(f2, p["wih_pack"][1, 0], preferred_element_type=jnp.float32)
                    + jnp.dot(b2, p["wih_pack"][1, 1], preferred_element_type=jnp.float32)
                    + p["b_pack"][1])
        xg_f = xg_f.reshape(T, B, G4)
        xg_b = xg_b.reshape(T, B, G4)

        hf = jnp.zeros((B, H), jnp.float32)
        hb = jnp.zeros((B, H), jnp.float32)
        cf = jnp.zeros((B, H), jnp.float32)
        cb = jnp.zeros((B, H), jnp.float32)
        out_f = jnp.zeros((T, B, H), jnp.float32)
        out_b = jnp.zeros((T, B, H), jnp.float32)
        hb1 = None
        for s in range(T):
            tb = T - 1 - s
            rec_f = jnp.dot(hf.astype(bf), p["whh_stack"][0], preferred_element_type=jnp.float32)
            rec_b = jnp.dot(hb.astype(bf), p["whh_stack"][1], preferred_element_type=jnp.float32)
            hf, cf = _lstm_cell(xg_f[s] + rec_f, cf, H)
            hb, cb = _lstm_cell(xg_b[tb] + rec_b, cb, H)
            out_f = out_f.at[s].set(hf)
            out_b = out_b.at[tb].set(hb)
            if s == 0:
                hb1 = hb
        if l < num_layers - 1:
            prev_f = out_f.astype(bf)
            prev_b = out_b.astype(bf)
        else:
            logits = (jnp.dot(hf.astype(bf), params["fc_w_split"][0],
                              preferred_element_type=jnp.float32)
                      + jnp.dot(hb1.astype(bf), params["fc_w_split"][1],
                                preferred_element_type=jnp.float32)
                      + params["fc_b"])
    return logits


# ----------------------------------------------------------------------------
# Deterministic parameter init (PyTorch-style uniform(-1/sqrt(H), 1/sqrt(H)))
# ----------------------------------------------------------------------------
def init_params(key, input_size, hidden_size, num_layers, num_classes):
    H = hidden_size
    stdv = 1.0 / (H ** 0.5)
    params = {"layers": []}
    for l in range(num_layers):
        in_sz = input_size if l == 0 else 2 * H
        raw = {}
        for d in ("f", "b"):
            key, k1, k2, k3, k4 = jax.random.split(key, 5)
            wih = jax.random.uniform(k1, (4 * H, in_sz), jnp.float32, -stdv, stdv)
            whh = jax.random.uniform(k2, (4 * H, H), jnp.float32, -stdv, stdv)
            bih = jax.random.uniform(k3, (4 * H,), jnp.float32, -stdv, stdv)
            bhh = jax.random.uniform(k4, (4 * H,), jnp.float32, -stdv, stdv)
            raw[f"wih_{d}_t"] = wih.T                       # (Din, 4H) f32
            raw[f"whh_{d}_t"] = whh.T                       # (H, 4H)   f32
            raw[f"b_{d}"] = (bih + bhh).reshape(1, -1)      # (1, 4H)   f32
        layer = dict(raw)
        # Packed kernel layouts (bf16 matmul operands, f32 bias).
        if l == 0:
            layer["wih_pack"] = jnp.stack(
                [raw["wih_f_t"], raw["wih_b_t"]]).astype(jnp.bfloat16)       # (2, Din, 4H)
        else:
            layer["wih_pack"] = jnp.stack([
                jnp.stack([raw["wih_f_t"][:H], raw["wih_f_t"][H:]]),
                jnp.stack([raw["wih_b_t"][:H], raw["wih_b_t"][H:]]),
            ]).astype(jnp.bfloat16)                                          # (2, 2, H, 4H)
        layer["b_pack"] = jnp.stack([raw["b_f"], raw["b_b"]])                # (2, 1, 4H) f32
        layer["whh_stack"] = jnp.stack(
            [raw["whh_f_t"], raw["whh_b_t"]]).astype(jnp.bfloat16)           # (2, H, 4H)
        params["layers"].append(layer)

    key, k1, k2 = jax.random.split(key, 3)
    stdv_fc = 1.0 / ((2 * H) ** 0.5)
    fc_w = jax.random.uniform(k1, (num_classes, 2 * H), jnp.float32, -stdv_fc, stdv_fc)
    fc_b = jax.random.uniform(k2, (num_classes,), jnp.float32, -stdv_fc, stdv_fc)
    params["fc_w_t"] = fc_w.T                                   # (2H, C) f32
    params["fc_b"] = fc_b.reshape(1, -1)                        # (1, C)  f32
    params["fc_w_split"] = jnp.stack(
        [fc_w.T[:H], fc_w.T[H:]]).astype(jnp.bfloat16)          # (2, H, C)
    return params


if __name__ == "__main__":
    B, T, INPUT_SIZE = 2, 8, 16
    HIDDEN, NUM_LAYERS, NUM_CLASSES = 32, 2, 10

    key = jax.random.PRNGKey(0)
    key, kx, kp = jax.random.split(key, 3)
    x = jax.random.normal(kx, (B, T, INPUT_SIZE), jnp.float32)
    params = init_params(kp, INPUT_SIZE, HIDDEN, NUM_LAYERS, NUM_CLASSES)

    # time_chunk=4 -> grid of 2 chunks, exercising the cross-chunk state carry.
    out = jax.block_until_ready(rnn_forward(x, params, NUM_LAYERS, time_chunk=4))
    assert out.shape == (B, NUM_CLASSES)

    # Tight check vs. a reference doing the same bf16-operand / f32-accumulate math.
    ref_m = jax.block_until_ready(rnn_forward_ref_matched(x, params, NUM_LAYERS))
    assert jnp.allclose(out, ref_m, atol=3e-3, rtol=3e-3), (
        f"max diff vs matched ref: {jnp.max(jnp.abs(out - ref_m))}")

    # Looser sanity check vs. an independent pure-f32 reference (bf16 weight/act drift).
    ref_f = jax.block_until_ready(rnn_forward_ref_f32(x, params, NUM_LAYERS))
    assert jnp.allclose(out, ref_f, atol=5e-2, rtol=5e-2), (
        f"max diff vs f32 ref: {jnp.max(jnp.abs(out - ref_f))}")

    print("KERNEL_OK")
</pallas_src>

<mosaic_0001>
module attributes {stable_mosaic.version = 11 : i64} {
  func.func @kernel(%arg0: i32, %arg1: memref<4x8x16xf32, #tpu.memory_space<vmem>>, %arg2: memref<4x8x16xf32, #tpu.memory_space<vmem>>, %arg3: memref<2x16x128xbf16, #tpu.memory_space<vmem>>, %arg4: memref<2x1x128xf32, #tpu.memory_space<vmem>>, %arg5: memref<2x32x128xbf16, #tpu.memory_space<vmem>>, %arg6: memref<4x8x32xbf16, #tpu.memory_space<vmem>>, %arg7: memref<4x8x32xbf16, #tpu.memory_space<vmem>>, %arg8: memref<4x8x128xf32, #tpu.memory_space<vmem>>, %arg9: memref<4x8x128xf32, #tpu.memory_space<vmem>>, %arg10: memref<2x8x32xf32, #tpu.memory_space<vmem>>, %arg11: memref<2x8x32xf32, #tpu.memory_space<vmem>>) attributes {dimension_semantics = [#tpu.dimension_semantics<arbitrary>], iteration_bounds = array<i64: 2>, scalar_prefetch = 0 : i64, scratch_operands = 4 : i64, tpu.core_type = #tpu.core_type<tc>, window_params = [{transform_indices = @transform_0, window_bounds = array<i64: 4, 8, 16>}, {transform_indices = @transform_1, window_bounds = array<i64: 4, 8, 16>}, {pipeline_mode = #tpu.pipeline_mode<synchronous>, transform_indices = @transform_2, window_bounds = array<i64: 2, 16, 128>}, {pipeline_mode = #tpu.pipeline_mode<synchronous>, transform_indices = @transform_3, window_bounds = array<i64: 2, 1, 128>}, {pipeline_mode = #tpu.pipeline_mode<synchronous>, transform_indices = @transform_4, window_bounds = array<i64: 2, 32, 128>}, {transform_indices = @transform_5, window_bounds = array<i64: 4, 8, 32>}, {transform_indices = @transform_6, window_bounds = array<i64: 4, 8, 32>}]} {
    %c0_i32 = arith.constant 0 : i32
    %0 = arith.cmpi eq, %arg0, %c0_i32 : i32
    %1 = arith.extui %0 : i1 to i32
    %c0_i32_0 = arith.constant 0 : i32
    %2 = arith.cmpi ne, %1, %c0_i32_0 : i32
    scf.if %2 {
      %cst_123 = arith.constant 0.000000e+00 : f32
      %343 = vector.broadcast %cst_123 : f32 to vector<2x8x32xf32>
      %c0_124 = arith.constant 0 : index
      %c0_125 = arith.constant 0 : index
      %c0_126 = arith.constant 0 : index
      %344 = vector.load %arg10[%c0_124, %c0_125, %c0_126] : memref<2x8x32xf32, #tpu.memory_space<vmem>>, vector<2x8x32xf32>
      tpu.vector_store %arg10[%c0_124, %c0_125, %c0_126], %343 {strides = array<i32>} : memref<2x8x32xf32, #tpu.memory_space<vmem>>, vector<2x8x32xf32>,
      %cst_127 = arith.constant 0.000000e+00 : f32
      %345 = vector.broadcast %cst_127 : f32 to vector<2x8x32xf32>
      %c0_128 = arith.constant 0 : index
      %c0_129 = arith.constant 0 : index
      %c0_130 = arith.constant 0 : index
      %346 = vector.load %arg11[%c0_128, %c0_129, %c0_130] : memref<2x8x32xf32, #tpu.memory_space<vmem>>, vector<2x8x32xf32>
      tpu.vector_store %arg11[%c0_128, %c0_129, %c0_130], %345 {strides = array<i32>} : memref<2x8x32xf32, #tpu.memory_space<vmem>>, vector<2x8x32xf32>,
    } else {
    }
    %c0 = arith.constant 0 : index
    %c0_1 = arith.constant 0 : index
    %c0_2 = arith.constant 0 : index
    %3 = vector.load %arg1[%c0, %c0_1, %c0_2] : memref<4x8x16xf32, #tpu.memory_space<vmem>>, vector<4x8x16xf32>
    %4 = vector.shape_cast %3 : vector<4x8x16xf32> to vector<32x16xf32>
    %5 = arith.truncf %4 : vector<32x16xf32> to vector<32x16xbf16>
    %c0_3 = arith.constant 0 : index
    %c0_4 = arith.constant 0 : index
    %c0_5 = arith.constant 0 : index
    %6 = vector.load %arg3[%c0_3, %c0_4, %c0_5] : memref<2x16x128xbf16, #tpu.memory_space<vmem>>, vector<1x16x128xbf16>
    %7 = vector.shape_cast %6 : vector<1x16x128xbf16> to vector<16x128xbf16>
    %cst = arith.constant dense<0.000000e+00> : vector<32x128xf32>
    %8 = tpu.matmul %5, %7, %cst {dimension_numbers = #tpu.dot_dimension_numbers<[1], [0], [0], [1], [0, 0, 1, 1], [], []>} : vector<32x16xbf16>, vector<16x128xbf16>, vector<32x128xf32> -> vector<32x128xf32>
    %c0_6 = arith.constant 0 : index
    %c0_7 = arith.constant 0 : index
    %c0_8 = arith.constant 0 : index
    %9 = vector.load %arg4[%c0_6, %c0_7, %c0_8] : memref<2x1x128xf32, #tpu.memory_space<vmem>>, vector<1x1x128xf32>
    %10 = vector.shape_cast %9 : vector<1x1x128xf32> to vector<1x128xf32>
    %11 = vector.broadcast %10 : vector<1x128xf32> to vector<32x128xf32>
    %12 = arith.addf %8, %11 : vector<32x128xf32>
    %13 = vector.shape_cast %12 : vector<32x128xf32> to vector<4x8x128xf32>
    %c0_9 = arith.constant 0 : index
    %c0_10 = arith.constant 0 : index
    %c0_11 = arith.constant 0 : index
    %14 = vector.load %arg8[%c0_9, %c0_10, %c0_11] : memref<4x8x128xf32, #tpu.memory_space<vmem>>, vector<4x8x128xf32>
    tpu.vector_store %arg8[%c0_9, %c0_10, %c0_11], %13 {strides = array<i32>} : memref<4x8x128xf32, #tpu.memory_space<vmem>>, vector<4x8x128xf32>,
    %c0_12 = arith.constant 0 : index
    %c0_13 = arith.constant 0 : index
    %c0_14 = arith.constant 0 : index
    %15 = vector.load %arg2[%c0_12, %c0_13, %c0_14] : memref<4x8x16xf32, #tpu.memory_space<vmem>>, vector<4x8x16xf32>
    %16 = vector.shape_cast %15 : vector<4x8x16xf32> to vector<32x16xf32>
    %17 = arith.truncf %16 : vector<32x16xf32> to vector<32x16xbf16>
    %c1 = arith.constant 1 : index
    %c0_15 = arith.constant 0 : index
    %c0_16 = arith.constant 0 : index
    %18 = vector.load %arg3[%c1, %c0_15, %c0_16] : memref<2x16x128xbf16, #tpu.memory_space<vmem>>, vector<1x16x128xbf16>
    %19 = vector.shape_cast %18 : vector<1x16x128xbf16> to vector<16x128xbf16>
    %cst_17 = arith.constant dense<0.000000e+00> : vector<32x128xf32>
    %20 = tpu.matmul %17, %19, %cst_17 {dimension_numbers = #tpu.dot_dimension_numbers<[1], [0], [0], [1], [0, 0, 1, 1], [], []>} : vector<32x16xbf16>, vector<16x128xbf16>, vector<32x128xf32> -> vector<32x128xf32>
    %c1_18 = arith.constant 1 : index
    %c0_19 = arith.constant 0 : index
    %c0_20 = arith.constant 0 : index
    %21 = vector.load %arg4[%c1_18, %c0_19, %c0_20] : memref<2x1x128xf32, #tpu.memory_space<vmem>>, vector<1x1x128xf32>
    %22 = vector.shape_cast %21 : vector<1x1x128xf32> to vector<1x128xf32>
    %23 = vector.broadcast %22 : vector<1x128xf32> to vector<32x128xf32>
    %24 = arith.addf %20, %23 : vector<32x128xf32>
    %25 = vector.shape_cast %24 : vector<32x128xf32> to vector<4x8x128xf32>
    %c0_21 = arith.constant 0 : index
    %c0_22 = arith.constant 0 : index
    %c0_23 = arith.constant 0 : index
    %26 = vector.load %arg9[%c0_21, %c0_22, %c0_23] : memref<4x8x128xf32, #tpu.memory_space<vmem>>, vector<4x8x128xf32>
    tpu.vector_store %arg9[%c0_21, %c0_22, %c0_23], %25 {strides = array<i32>} : memref<4x8x128xf32, #tpu.memory_space<vmem>>, vector<4x8x128xf32>,
    %c0_24 = arith.constant 0 : index
    %c0_25 = arith.constant 0 : index
    %c0_26 = arith.constant 0 : index
    %27 = vector.load %arg5[%c0_24, %c0_25, %c0_26] : memref<2x32x128xbf16, #tpu.memory_space<vmem>>, vector<1x32x128xbf16>
    %28 = vector.shape_cast %27 : vector<1x32x128xbf16> to vector<32x128xbf16>
    %c1_27 = arith.constant 1 : index
    %c0_28 = arith.constant 0 : index
    %c0_29 = arith.constant 0 : index
    %29 = vector.load %arg5[%c1_27, %c0_28, %c0_29] : memref<2x32x128xbf16, #tpu.memory_space<vmem>>, vector<1x32x128xbf16>
    %30 = vector.shape_cast %29 : vector<1x32x128xbf16> to vector<32x128xbf16>
    %c0_30 = arith.constant 0 : index
    %c0_31 = arith.constant 0 : index
    %c0_32 = arith.constant 0 : index
    %31 = vector.load %arg10[%c0_30, %c0_31, %c0_32] : memref<2x8x32xf32, #tpu.memory_space<vmem>>, vector<1x8x32xf32>
    %32 = vector.shape_cast %31 : vector<1x8x32xf32> to vector<8x32xf32>
    %c1_33 = arith.constant 1 : index
    %c0_34 = arith.constant 0 : index
    %c0_35 = arith.constant 0 : index
    %33 = vector.load %arg10[%c1_33, %c0_34, %c0_35] : memref<2x8x32xf32, #tpu.memory_space<vmem>>, vector<1x8x32xf32>
    %34 = vector.shape_cast %33 : vector<1x8x32xf32> to vector<8x32xf32>
    %c0_36 = arith.constant 0 : index
    %c0_37 = arith.constant 0 : index
    %c0_38 = arith.constant 0 : index
    %35 = vector.load %arg11[%c0_36, %c0_37, %c0_38] : memref<2x8x32xf32, #tpu.memory_space<vmem>>, vector<1x8x32xf32>
    %36 = vector.shape_cast %35 : vector<1x8x32xf32> to vector<8x32xf32>
    %c1_39 = arith.constant 1 : index
    %c0_40 = arith.constant 0 : index
    %c0_41 = arith.constant 0 : index
    %37 = vector.load %arg11[%c1_39, %c0_40, %c0_41] : memref<2x8x32xf32, #tpu.memory_space<vmem>>, vector<1x8x32xf32>
    %38 = vector.shape_cast %37 : vector<1x8x32xf32> to vector<8x32xf32>
    %c0_i32_42 = arith.constant 0 : i32
    %c3_i32 = arith.constant 3 : i32
    %39 = arith.subi %c3_i32, %c0_i32_42 : i32
    %40 = arith.truncf %32 : vector<8x32xf32> to vector<8x32xbf16>
    %cst_43 = arith.constant dense<0.000000e+00> : vector<8x128xf32>
    %41 = tpu.matmul %40, %28, %cst_43 {dimension_numbers = #tpu.dot_dimension_numbers<[1], [0], [0], [1], [0, 0, 1, 1], [], []>} : vector<8x32xbf16>, vector<32x128xbf16>, vector<8x128xf32> -> vector<8x128xf32>
    %42 = arith.truncf %34 : vector<8x32xf32> to vector<8x32xbf16>
    %cst_44 = arith.constant dense<0.000000e+00> : vector<8x128xf32>
    %43 = tpu.matmul %42, %30, %cst_44 {dimension_numbers = #tpu.dot_dimension_numbers<[1], [0], [0], [1], [0, 0, 1, 1], [], []>} : vector<8x32xbf16>, vector<32x128xbf16>, vector<8x128xf32> -> vector<8x128xf32>
    %44 = arith.index_cast %c0_i32_42 : i32 to index
    %c0_45 = arith.constant 0 : index
    %c0_46 = arith.constant 0 : index
    %45 = vector.load %arg8[%44, %c0_45, %c0_46] : memref<4x8x128xf32, #tpu.memory_space<vmem>>, vector<1x8x128xf32>
    %46 = vector.shape_cast %45 : vector<1x8x128xf32> to vector<8x128xf32>
    %47 = arith.addf %46, %41 : vector<8x128xf32>
    %48 = arith.index_cast %39 : i32 to index
    %c0_47 = arith.constant 0 : index
    %c0_48 = arith.constant 0 : index
    %49 = vector.load %arg9[%48, %c0_47, %c0_48] : memref<4x8x128xf32, #tpu.memory_space<vmem>>, vector<1x8x128xf32>
    %50 = vector.shape_cast %49 : vector<1x8x128xf32> to vector<8x128xf32>
    %51 = arith.addf %50, %43 : vector<8x128xf32>
    %52 = vector.extract_strided_slice %47 {offsets = [0, 0], sizes = [8, 32], strides = [1, 1]} : vector<8x128xf32> to vector<8x32xf32>
    %53 = arith.negf %52 : vector<8x32xf32>
    %54 = math.exp %53 : vector<8x32xf32>
    %cst_49 = arith.constant 1.000000e+00 : f32
    %55 = vector.broadcast %cst_49 : f32 to vector<8x32xf32>
    %56 = arith.addf %55, %54 : vector<8x32xf32>
    %57 = arith.divf %55, %56 : vector<8x32xf32>
    %58 = vector.extract_strided_slice %47 {offsets = [0, 32], sizes = [8, 32], strides = [1, 1]} : vector<8x128xf32> to vector<8x32xf32>
    %59 = arith.negf %58 : vector<8x32xf32>
    %60 = math.exp %59 : vector<8x32xf32>
    %cst_50 = arith.constant 1.000000e+00 : f32
    %61 = vector.broadcast %cst_50 : f32 to vector<8x32xf32>
    %62 = arith.addf %61, %60 : vector<8x32xf32>
    %63 = arith.divf %61, %62 : vector<8x32xf32>
    %64 = vector.extract_strided_slice %47 {offsets = [0, 64], sizes = [8, 32], strides = [1, 1]} : vector<8x128xf32> to vector<8x32xf32>
    %65 = math.tanh %64 : vector<8x32xf32>
    %66 = vector.extract_strided_slice %47 {offsets = [0, 96], sizes = [8, 32], strides = [1, 1]} : vector<8x128xf32> to vector<8x32xf32>
    %67 = arith.negf %66 : vector<8x32xf32>
    %68 = math.exp %67 : vector<8x32xf32>
    %cst_51 = arith.constant 1.000000e+00 : f32
    %69 = vector.broadcast %cst_51 : f32 to vector<8x32xf32>
    %70 = arith.addf %69, %68 : vector<8x32xf32>
    %71 = arith.divf %69, %70 : vector<8x32xf32>
    %72 = arith.mulf %63, %36 : vector<8x32xf32>
    %73 = arith.mulf %57, %65 : vector<8x32xf32>
    %74 = arith.addf %72, %73 : vector<8x32xf32>
    %75 = math.tanh %74 : vector<8x32xf32>
    %76 = arith.mulf %71, %75 : vector<8x32xf32>
    %77 = vector.extract_strided_slice %51 {offsets = [0, 0], sizes = [8, 32], strides = [1, 1]} : vector<8x128xf32> to vector<8x32xf32>
    %78 = arith.negf %77 : vector<8x32xf32>
    %79 = math.exp %78 : vector<8x32xf32>
    %cst_52 = arith.constant 1.000000e+00 : f32
    %80 = vector.broadcast %cst_52 : f32 to vector<8x32xf32>
    %81 = arith.addf %80, %79 : vector<8x32xf32>
    %82 = arith.divf %80, %81 : vector<8x32xf32>
    %83 = vector.extract_strided_slice %51 {offsets = [0, 32], sizes = [8, 32], strides = [1, 1]} : vector<8x128xf32> to vector<8x32xf32>
    %84 = arith.negf %83 : vector<8x32xf32>
    %85 = math.exp %84 : vector<8x32xf32>
    %cst_53 = arith.constant 1.000000e+00 : f32
    %86 = vector.broadcast %cst_53 : f32 to vector<8x32xf32>
    %87 = arith.addf %86, %85 : vector<8x32xf32>
    %88 = arith.divf %86, %87 : vector<8x32xf32>
    %89 = vector.extract_strided_slice %51 {offsets = [0, 64], sizes = [8, 32], strides = [1, 1]} : vector<8x128xf32> to vector<8x32xf32>
    %90 = math.tanh %89 : vector<8x32xf32>
    %91 = vector.extract_strided_slice %51 {offsets = [0, 96], sizes = [8, 32], strides = [1, 1]} : vector<8x128xf32> to vector<8x32xf32>
    %92 = arith.negf %91 : vector<8x32xf32>
    %93 = math.exp %92 : vector<8x32xf32>
    %cst_54 = arith.constant 1.000000e+00 : f32
    %94 = vector.broadcast %cst_54 : f32 to vector<8x32xf32>
    %95 = arith.addf %94, %93 : vector<8x32xf32>
    %96 = arith.divf %94, %95 : vector<8x32xf32>
    %97 = arith.mulf %88, %38 : vector<8x32xf32>
    %98 = arith.mulf %82, %90 : vector<8x32xf32>
    %99 = arith.addf %97, %98 : vector<8x32xf32>
    %100 = math.tanh %99 : vector<8x32xf32>
    %101 = arith.mulf %96, %100 : vector<8x32xf32>
    %102 = arith.truncf %76 : vector<8x32xf32> to vector<8x32xbf16>
    %103 = arith.index_cast %c0_i32_42 : i32 to index
    %c0_55 = arith.constant 0 : index
    %c0_56 = arith.constant 0 : index
    %104 = vector.load %arg6[%103, %c0_55, %c0_56] : memref<4x8x32xbf16, #tpu.memory_space<vmem>>, vector<1x8x32xbf16>
    %105 = vector.shape_cast %104 : vector<1x8x32xbf16> to vector<8x32xbf16>
    %106 = vector.shape_cast %102 : vector<8x32xbf16> to vector<1x8x32xbf16>
    tpu.vector_store %arg6[%103, %c0_55, %c0_56], %106 {strides = array<i32>} : memref<4x8x32xbf16, #tpu.memory_space<vmem>>, vector<1x8x32xbf16>,
    %107 = arith.truncf %101 : vector<8x32xf32> to vector<8x32xbf16>
    %108 = arith.index_cast %39 : i32 to index
    %c0_57 = arith.constant 0 : index
    %c0_58 = arith.constant 0 : index
    %109 = vector.load %arg7[%108, %c0_57, %c0_58] : memref<4x8x32xbf16, #tpu.memory_space<vmem>>, vector<1x8x32xbf16>
    %110 = vector.shape_cast %109 : vector<1x8x32xbf16> to vector<8x32xbf16>
    %111 = vector.shape_cast %107 : vector<8x32xbf16> to vector<1x8x32xbf16>
    tpu.vector_store %arg7[%108, %c0_57, %c0_58], %111 {strides = array<i32>} : memref<4x8x32xbf16, #tpu.memory_space<vmem>>, vector<1x8x32xbf16>,
    %c1_i32 = arith.constant 1 : i32
    %c3_i32_59 = arith.constant 3 : i32
    %112 = arith.subi %c3_i32_59, %c1_i32 : i32
    %113 = arith.truncf %76 : vector<8x32xf32> to vector<8x32xbf16>
    %cst_60 = arith.constant dense<0.000000e+00> : vector<8x128xf32>
    %114 = tpu.matmul %113, %28, %cst_60 {dimension_numbers = #tpu.dot_dimension_numbers<[1], [0], [0], [1], [0, 0, 1, 1], [], []>} : vector<8x32xbf16>, vector<32x128xbf16>, vector<8x128xf32> -> vector<8x128xf32>
    %115 = arith.truncf %101 : vector<8x32xf32> to vector<8x32xbf16>
    %cst_61 = arith.constant dense<0.000000e+00> : vector<8x128xf32>
    %116 = tpu.matmul %115, %30, %cst_61 {dimension_numbers = #tpu.dot_dimension_numbers<[1], [0], [0], [1], [0, 0, 1, 1], [], []>} : vector<8x32xbf16>, vector<32x128xbf16>, vector<8x128xf32> -> vector<8x128xf32>
    %117 = arith.index_cast %c1_i32 : i32 to index
    %c0_62 = arith.constant 0 : index
    %c0_63 = arith.constant 0 : index
    %118 = vector.load %arg8[%117, %c0_62, %c0_63] : memref<4x8x128xf32, #tpu.memory_space<vmem>>, vector<1x8x128xf32>
    %119 = vector.shape_cast %118 : vector<1x8x128xf32> to vector<8x128xf32>
    %120 = arith.addf %119, %114 : vector<8x128xf32>
    %121 = arith.index_cast %112 : i32 to index
    %c0_64 = arith.constant 0 : index
    %c0_65 = arith.constant 0 : index
    %122 = vector.load %arg9[%121, %c0_64, %c0_65] : memref<4x8x128xf32, #tpu.memory_space<vmem>>, vector<1x8x128xf32>
    %123 = vector.shape_cast %122 : vector<1x8x128xf32> to vector<8x128xf32>
    %124 = arith.addf %123, %116 : vector<8x128xf32>
    %125 = vector.extract_strided_slice %120 {offsets = [0, 0], sizes = [8, 32], strides = [1, 1]} : vector<8x128xf32> to vector<8x32xf32>
    %126 = arith.negf %125 : vector<8x32xf32>
    %127 = math.exp %126 : vector<8x32xf32>
    %cst_66 = arith.constant 1.000000e+00 : f32
    %128 = vector.broadcast %cst_66 : f32 to vector<8x32xf32>
    %129 = arith.addf %128, %127 : vector<8x32xf32>
    %130 = arith.divf %128, %129 : vector<8x32xf32>
    %131 = vector.extract_strided_slice %120 {offsets = [0, 32], sizes = [8, 32], strides = [1, 1]} : vector<8x128xf32> to vector<8x32xf32>
    %132 = arith.negf %131 : vector<8x32xf32>
    %133 = math.exp %132 : vector<8x32xf32>
    %cst_67 = arith.constant 1.000000e+00 : f32
    %134 = vector.broadcast %cst_67 : f32 to vector<8x32xf32>
    %135 = arith.addf %134, %133 : vector<8x32xf32>
    %136 = arith.divf %134, %135 : vector<8x32xf32>
    %137 = vector.extract_strided_slice %120 {offsets = [0, 64], sizes = [8, 32], strides = [1, 1]} : vector<8x128xf32> to vector<8x32xf32>
    %138 = math.tanh %137 : vector<8x32xf32>
    %139 = vector.extract_strided_slice %120 {offsets = [0, 96], sizes = [8, 32], strides = [1, 1]} : vector<8x128xf32> to vector<8x32xf32>
    %140 = arith.negf %139 : vector<8x32xf32>
    %141 = math.exp %140 : vector<8x32xf32>
    %cst_68 = arith.constant 1.000000e+00 : f32
    %142 = vector.broadcast %cst_68 : f32 to vector<8x32xf32>
    %143 = arith.addf %142, %141 : vector<8x32xf32>
    %144 = arith.divf %142, %143 : vector<8x32xf32>
    %145 = arith.mulf %136, %74 : vector<8x32xf32>
    %146 = arith.mulf %130, %138 : vector<8x32xf32>
    %147 = arith.addf %145, %146 : vector<8x32xf32>
    %148 = math.tanh %147 : vector<8x32xf32>
    %149 = arith.mulf %144, %148 : vector<8x32xf32>
    %150 = vector.extract_strided_slice %124 {offsets = [0, 0], sizes = [8, 32], strides = [1, 1]} : vector<8x128xf32> to vector<8x32xf32>
    %151 = arith.negf %150 : vector<8x32xf32>
    %152 = math.exp %151 : vector<8x32xf32>
    %cst_69 = arith.constant 1.000000e+00 : f32
    %153 = vector.broadcast %cst_69 : f32 to vector<8x32xf32>
    %154 = arith.addf %153, %152 : vector<8x32xf32>
    %155 = arith.divf %153, %154 : vector<8x32xf32>
    %156 = vector.extract_strided_slice %124 {offsets = [0, 32], sizes = [8, 32], strides = [1, 1]} : vector<8x128xf32> to vector<8x32xf32>
    %157 = arith.negf %156 : vector<8x32xf32>
    %158 = math.exp %157 : vector<8x32xf32>
    %cst_70 = arith.constant 1.000000e+00 : f32
    %159 = vector.broadcast %cst_70 : f32 to vector<8x32xf32>
    %160 = arith.addf %159, %158 : vector<8x32xf32>
    %161 = arith.divf %159, %160 : vector<8x32xf32>
    %162 = vector.extract_strided_slice %124 {offsets = [0, 64], sizes = [8, 32], strides = [1, 1]} : vector<8x128xf32> to vector<8x32xf32>
    %163 = math.tanh %162 : vector<8x32xf32>
    %164 = vector.extract_strided_slice %124 {offsets = [0, 96], sizes = [8, 32], strides = [1, 1]} : vector<8x128xf32> to vector<8x32xf32>
    %165 = arith.negf %164 : vector<8x32xf32>
    %166 = math.exp %165 : vector<8x32xf32>
    %cst_71 = arith.constant 1.000000e+00 : f32
    %167 = vector.broadcast %cst_71 : f32 to vector<8x32xf32>
    %168 = arith.addf %167, %166 : vector<8x32xf32>
    %169 = arith.divf %167, %168 : vector<8x32xf32>
    %170 = arith.mulf %161, %99 : vector<8x32xf32>
    %171 = arith.mulf %155, %163 : vector<8x32xf32>
    %172 = arith.addf %170, %171 : vector<8x32xf32>
    %173 = math.tanh %172 : vector<8x32xf32>
    %174 = arith.mulf %169, %173 : vector<8x32xf32>
    %175 = arith.truncf %149 : vector<8x32xf32> to vector<8x32xbf16>
    %176 = arith.index_cast %c1_i32 : i32 to index
    %c0_72 = arith.constant 0 : index
    %c0_73 = arith.constant 0 : index
    %177 = vector.load %arg6[%176, %c0_72, %c0_73] : memref<4x8x32xbf16, #tpu.memory_space<vmem>>, vector<1x8x32xbf16>
    %178 = vector.shape_cast %177 : vector<1x8x32xbf16> to vector<8x32xbf16>
    %179 = vector.shape_cast %175 : vector<8x32xbf16> to vector<1x8x32xbf16>
    tpu.vector_store %arg6[%176, %c0_72, %c0_73], %179 {strides = array<i32>} : memref<4x8x32xbf16, #tpu.memory_space<vmem>>, vector<1x8x32xbf16>,
    %180 = arith.truncf %174 : vector<8x32xf32> to vector<8x32xbf16>
    %181 = arith.index_cast %112 : i32 to index
    %c0_74 = arith.constant 0 : index
    %c0_75 = arith.constant 0 : index
    %182 = vector.load %arg7[%181, %c0_74, %c0_75] : memref<4x8x32xbf16, #tpu.memory_space<vmem>>, vector<1x8x32xbf16>
    %183 = vector.shape_cast %182 : vector<1x8x32xbf16> to vector<8x32xbf16>
    %184 = vector.shape_cast %180 : vector<8x32xbf16> to vector<1x8x32xbf16>
    tpu.vector_store %arg7[%181, %c0_74, %c0_75], %184 {strides = array<i32>} : memref<4x8x32xbf16, #tpu.memory_space<vmem>>, vector<1x8x32xbf16>,
    %c2_i32 = arith.constant 2 : i32
    %c3_i32_76 = arith.constant 3 : i32
    %185 = arith.subi %c3_i32_76, %c2_i32 : i32
    %186 = arith.truncf %149 : vector<8x32xf32> to vector<8x32xbf16>
    %cst_77 = arith.constant dense<0.000000e+00> : vector<8x128xf32>
    %187 = tpu.matmul %186, %28, %cst_77 {dimension_numbers = #tpu.dot_dimension_numbers<[1], [0], [0], [1], [0, 0, 1, 1], [], []>} : vector<8x32xbf16>, vector<32x128xbf16>, vector<8x128xf32> -> vector<8x128xf32>
    %188 = arith.truncf %174 : vector<8x32xf32> to vector<8x32xbf16>
    %cst_78 = arith.constant dense<0.000000e+00> : vector<8x128xf32>
    %189 = tpu.matmul %188, %30, %cst_78 {dimension_numbers = #tpu.dot_dimension_numbers<[1], [0], [0], [1], [0, 0, 1, 1], [], []>} : vector<8x32xbf16>, vector<32x128xbf16>, vector<8x128xf32> -> vector<8x128xf32>
    %190 = arith.index_cast %c2_i32 : i32 to index
    %c0_79 = arith.constant 0 : index
    %c0_80 = arith.constant 0 : index
    %191 = vector.load %arg8[%190, %c0_79, %c0_80] : memref<4x8x128xf32, #tpu.memory_space<vmem>>, vector<1x8x128xf32>
    %192 = vector.shape_cast %191 : vector<1x8x128xf32> to vector<8x128xf32>
    %193 = arith.addf %192, %187 : vector<8x128xf32>
    %194 = arith.index_cast %185 : i32 to index
    %c0_81 = arith.constant 0 : index
    %c0_82 = arith.constant 0 : index
    %195 = vector.load %arg9[%194, %c0_81, %c0_82] : memref<4x8x128xf32, #tpu.memory_space<vmem>>, vector<1x8x128xf32>
    %196 = vector.shape_cast %195 : vector<1x8x128xf32> to vector<8x128xf32>
    %197 = arith.addf %196, %189 : vector<8x128xf32>
    %198 = vector.extract_strided_slice %193 {offsets = [0, 0], sizes = [8, 32], strides = [1, 1]} : vector<8x128xf32> to vector<8x32xf32>
    %199 = arith.negf %198 : vector<8x32xf32>
    %200 = math.exp %199 : vector<8x32xf32>
    %cst_83 = arith.constant 1.000000e+00 : f32
    %201 = vector.broadcast %cst_83 : f32 to vector<8x32xf32>
    %202 = arith.addf %201, %200 : vector<8x32xf32>
    %203 = arith.divf %201, %202 : vector<8x32xf32>
    %204 = vector.extract_strided_slice %193 {offsets = [0, 32], sizes = [8, 32], strides = [1, 1]} : vector<8x128xf32> to vector<8x32xf32>
    %205 = arith.negf %204 : vector<8x32xf32>
    %206 = math.exp %205 : vector<8x32xf32>
    %cst_84 = arith.constant 1.000000e+00 : f32
    %207 = vector.broadcast %cst_84 : f32 to vector<8x32xf32>
    %208 = arith.addf %207, %206 : vector<8x32xf32>
    %209 = arith.divf %207, %208 : vector<8x32xf32>
    %210 = vector.extract_strided_slice %193 {offsets = [0, 64], sizes = [8, 32], strides = [1, 1]} : vector<8x128xf32> to vector<8x32xf32>
    %211 = math.tanh %210 : vector<8x32xf32>
    %212 = vector.extract_strided_slice %193 {offsets = [0, 96], sizes = [8, 32], strides = [1, 1]} : vector<8x128xf32> to vector<8x32xf32>
    %213 = arith.negf %212 : vector<8x32xf32>
    %214 = math.exp %213 : vector<8x32xf32>
    %cst_85 = arith.constant 1.000000e+00 : f32
    %215 = vector.broadcast %cst_85 : f32 to vector<8x32xf32>
    %216 = arith.addf %215, %214 : vector<8x32xf32>
    %217 = arith.divf %215, %216 : vector<8x32xf32>
    %218 = arith.mulf %209, %147 : vector<8x32xf32>
    %219 = arith.mulf %203, %211 : vector<8x32xf32>
    %220 = arith.addf %218, %219 : vector<8x32xf32>
    %221 = math.tanh %220 : vector<8x32xf32>
    %222 = arith.mulf %217, %221 : vector<8x32xf32>
    %223 = vector.extract_strided_slice %197 {offsets = [0, 0], sizes = [8, 32], strides = [1, 1]} : vector<8x128xf32> to vector<8x32xf32>
    %224 = arith.negf %223 : vector<8x32xf32>
    %225 = math.exp %224 : vector<8x32xf32>
    %cst_86 = arith.constant 1.000000e+00 : f32
    %226 = vector.broadcast %cst_86 : f32 to vector<8x32xf32>
    %227 = arith.addf %226, %225 : vector<8x32xf32>
    %228 = arith.divf %226, %227 : vector<8x32xf32>
    %229 = vector.extract_strided_slice %197 {offsets = [0, 32], sizes = [8, 32], strides = [1, 1]} : vector<8x128xf32> to vector<8x32xf32>
    %230 = arith.negf %229 : vector<8x32xf32>
    %231 = math.exp %230 : vector<8x32xf32>
    %cst_87 = arith.constant 1.000000e+00 : f32
    %232 = vector.broadcast %cst_87 : f32 to vector<8x32xf32>
    %233 = arith.addf %232, %231 : vector<8x32xf32>
    %234 = arith.divf %232, %233 : vector<8x32xf32>
    %235 = vector.extract_strided_slice %197 {offsets = [0, 64], sizes = [8, 32], strides = [1, 1]} : vector<8x128xf32> to vector<8x32xf32>
    %236 = math.tanh %235 : vector<8x32xf32>
    %237 = vector.extract_strided_slice %197 {offsets = [0, 96], sizes = [8, 32], strides = [1, 1]} : vector<8x128xf32> to vector<8x32xf32>
    %238 = arith.negf %237 : vector<8x32xf32>
    %239 = math.exp %238 : vector<8x32xf32>
    %cst_88 = arith.constant 1.000000e+00 : f32
    %240 = vector.broadcast %cst_88 : f32 to vector<8x32xf32>
    %241 = arith.addf %240, %239 : vector<8x32xf32>
    %242 = arith.divf %240, %241 : vector<8x32xf32>
    %243 = arith.mulf %234, %172 : vector<8x32xf32>
    %244 = arith.mulf %228, %236 : vector<8x32xf32>
    %245 = arith.addf %243, %244 : vector<8x32xf32>
    %246 = math.tanh %245 : vector<8x32xf32>
    %247 = arith.mulf %242, %246 : vector<8x32xf32>
    %248 = arith.truncf %222 : vector<8x32xf32> to vector<8x32xbf16>
    %249 = arith.index_cast %c2_i32 : i32 to index
    %c0_89 = arith.constant 0 : index
    %c0_90 = arith.constant 0 : index
    %250 = vector.load %arg6[%249, %c0_89, %c0_90] : memref<4x8x32xbf16, #tpu.memory_space<vmem>>, vector<1x8x32xbf16>
    %251 = vector.shape_cast %250 : vector<1x8x32xbf16> to vector<8x32xbf16>
    %252 = vector.shape_cast %248 : vector<8x32xbf16> to vector<1x8x32xbf16>
    tpu.vector_store %arg6[%249, %c0_89, %c0_90], %252 {strides = array<i32>} : memref<4x8x32xbf16, #tpu.memory_space<vmem>>, vector<1x8x32xbf16>,
    %253 = arith.truncf %247 : vector<8x32xf32> to vector<8x32xbf16>
    %254 = arith.index_cast %185 : i32 to index
    %c0_91 = arith.constant 0 : index
    %c0_92 = arith.constant 0 : index
    %255 = vector.load %arg7[%254, %c0_91, %c0_92] : memref<4x8x32xbf16, #tpu.memory_space<vmem>>, vector<1x8x32xbf16>
    %256 = vector.shape_cast %255 : vector<1x8x32xbf16> to vector<8x32xbf16>
    %257 = vector.shape_cast %253 : vector<8x32xbf16> to vector<1x8x32xbf16>
    tpu.vector_store %arg7[%254, %c0_91, %c0_92], %257 {strides = array<i32>} : memref<4x8x32xbf16, #tpu.memory_space<vmem>>, vector<1x8x32xbf16>,
    %c3_i32_93 = arith.constant 3 : i32
    %c3_i32_94 = arith.constant 3 : i32
    %258 = arith.subi %c3_i32_94, %c3_i32_93 : i32
    %259 = arith.truncf %222 : vector<8x32xf32> to vector<8x32xbf16>
    %cst_95 = arith.constant dense<0.000000e+00> : vector<8x128xf32>
    %260 = tpu.matmul %259, %28, %cst_95 {dimension_numbers = #tpu.dot_dimension_numbers<[1], [0], [0], [1], [0, 0, 1, 1], [], []>} : vector<8x32xbf16>, vector<32x128xbf16>, vector<8x128xf32> -> vector<8x128xf32>
    %261 = arith.truncf %247 : vector<8x32xf32> to vector<8x32xbf16>
    %cst_96 = arith.constant dense<0.000000e+00> : vector<8x128xf32>
    %262 = tpu.matmul %261, %30, %cst_96 {dimension_numbers = #tpu.dot_dimension_numbers<[1], [0], [0], [1], [0, 0, 1, 1], [], []>} : vector<8x32xbf16>, vector<32x128xbf16>, vector<8x128xf32> -> vector<8x128xf32>
    %263 = arith.index_cast %c3_i32_93 : i32 to index
    %c0_97 = arith.constant 0 : index
    %c0_98 = arith.constant 0 : index
    %264 = vector.load %arg8[%263, %c0_97, %c0_98] : memref<4x8x128xf32, #tpu.memory_space<vmem>>, vector<1x8x128xf32>
    %265 = vector.shape_cast %264 : vector<1x8x128xf32> to vector<8x128xf32>
    %266 = arith.addf %265, %260 : vector<8x128xf32>
    %267 = arith.index_cast %258 : i32 to index
    %c0_99 = arith.constant 0 : index
    %c0_100 = arith.constant 0 : index
    %268 = vector.load %arg9[%267, %c0_99, %c0_100] : memref<4x8x128xf32, #tpu.memory_space<vmem>>, vector<1x8x128xf32>
    %269 = vector.shape_cast %268 : vector<1x8x128xf32> to vector<8x128xf32>
    %270 = arith.addf %269, %262 : vector<8x128xf32>
    %271 = vector.extract_strided_slice %266 {offsets = [0, 0], sizes = [8, 32], strides = [1, 1]} : vector<8x128xf32> to vector<8x32xf32>
    %272 = arith.negf %271 : vector<8x32xf32>
    %273 = math.exp %272 : vector<8x32xf32>
    %cst_101 = arith.constant 1.000000e+00 : f32
    %274 = vector.broadcast %cst_101 : f32 to vector<8x32xf32>
    %275 = arith.addf %274, %273 : vector<8x32xf32>
    %276 = arith.divf %274, %275 : vector<8x32xf32>
    %277 = vector.extract_strided_slice %266 {offsets = [0, 32], sizes = [8, 32], strides = [1, 1]} : vector<8x128xf32> to vector<8x32xf32>
    %278 = arith.negf %277 : vector<8x32xf32>
    %279 = math.exp %278 : vector<8x32xf32>
    %cst_102 = arith.constant 1.000000e+00 : f32
    %280 = vector.broadcast %cst_102 : f32 to vector<8x32xf32>
    %281 = arith.addf %280, %279 : vector<8x32xf32>
    %282 = arith.divf %280, %281 : vector<8x32xf32>
    %283 = vector.extract_strided_slice %266 {offsets = [0, 64], sizes = [8, 32], strides = [1, 1]} : vector<8x128xf32> to vector<8x32xf32>
    %284 = math.tanh %283 : vector<8x32xf32>
    %285 = vector.extract_strided_slice %266 {offsets = [0, 96], sizes = [8, 32], strides = [1, 1]} : vector<8x128xf32> to vector<8x32xf32>
    %286 = arith.negf %285 : vector<8x32xf32>
    %287 = math.exp %286 : vector<8x32xf32>
    %cst_103 = arith.constant 1.000000e+00 : f32
    %288 = vector.broadcast %cst_103 : f32 to vector<8x32xf32>
    %289 = arith.addf %288, %287 : vector<8x32xf32>
    %290 = arith.divf %288, %289 : vector<8x32xf32>
    %291 = arith.mulf %282, %220 : vector<8x32xf32>
    %292 = arith.mulf %276, %284 : vector<8x32xf32>
    %293 = arith.addf %291, %292 : vector<8x32xf32>
    %294 = math.tanh %293 : vector<8x32xf32>
    %295 = arith.mulf %290, %294 : vector<8x32xf32>
    %296 = vector.extract_strided_slice %270 {offsets = [0, 0], sizes = [8, 32], strides = [1, 1]} : vector<8x128xf32> to vector<8x32xf32>
    %297 = arith.negf %296 : vector<8x32xf32>
    %298 = math.exp %297 : vector<8x32xf32>
    %cst_104 = arith.constant 1.000000e+00 : f32
    %299 = vector.broadcast %cst_104 : f32 to vector<8x32xf32>
    %300 = arith.addf %299, %298 : vector<8x32xf32>
    %301 = arith.divf %299, %300 : vector<8x32xf32>
    %302 = vector.extract_strided_slice %270 {offsets = [0, 32], sizes = [8, 32], strides = [1, 1]} : vector<8x128xf32> to vector<8x32xf32>
    %303 = arith.negf %302 : vector<8x32xf32>
    %304 = math.exp %303 : vector<8x32xf32>
    %cst_105 = arith.constant 1.000000e+00 : f32
    %305 = vector.broadcast %cst_105 : f32 to vector<8x32xf32>
    %306 = arith.addf %305, %304 : vector<8x32xf32>
    %307 = arith.divf %305, %306 : vector<8x32xf32>
    %308 = vector.extract_strided_slice %270 {offsets = [0, 64], sizes = [8, 32], strides = [1, 1]} : vector<8x128xf32> to vector<8x32xf32>
    %309 = math.tanh %308 : vector<8x32xf32>
    %310 = vector.extract_strided_slice %270 {offsets = [0, 96], sizes = [8, 32], strides = [1, 1]} : vector<8x128xf32> to vector<8x32xf32>
    %311 = arith.negf %310 : vector<8x32xf32>
    %312 = math.exp %311 : vector<8x32xf32>
    %cst_106 = arith.constant 1.000000e+00 : f32
    %313 = vector.broadcast %cst_106 : f32 to vector<8x32xf32>
    %314 = arith.addf %313, %312 : vector<8x32xf32>
    %315 = arith.divf %313, %314 : vector<8x32xf32>
    %316 = arith.mulf %307, %245 : vector<8x32xf32>
    %317 = arith.mulf %301, %309 : vector<8x32xf32>
    %318 = arith.addf %316, %317 : vector<8x32xf32>
    %319 = math.tanh %318 : vector<8x32xf32>
    %320 = arith.mulf %315, %319 : vector<8x32xf32>
    %321 = arith.truncf %295 : vector<8x32xf32> to vector<8x32xbf16>
    %322 = arith.index_cast %c3_i32_93 : i32 to index
    %c0_107 = arith.constant 0 : index
    %c0_108 = arith.constant 0 : index
    %323 = vector.load %arg6[%322, %c0_107, %c0_108] : memref<4x8x32xbf16, #tpu.memory_space<vmem>>, vector<1x8x32xbf16>
    %324 = vector.shape_cast %323 : vector<1x8x32xbf16> to vector<8x32xbf16>
    %325 = vector.shape_cast %321 : vector<8x32xbf16> to vector<1x8x32xbf16>
    tpu.vector_store %arg6[%322, %c0_107, %c0_108], %325 {strides = array<i32>} : memref<4x8x32xbf16, #tpu.memory_space<vmem>>, vector<1x8x32xbf16>,
    %326 = arith.truncf %320 : vector<8x32xf32> to vector<8x32xbf16>
    %327 = arith.index_cast %258 : i32 to index
    %c0_109 = arith.constant 0 : index
    %c0_110 = arith.constant 0 : index
    %328 = vector.load %arg7[%327, %c0_109, %c0_110] : memref<4x8x32xbf16, #tpu.memory_space<vmem>>, vector<1x8x32xbf16>
    %329 = vector.shape_cast %328 : vector<1x8x32xbf16> to vector<8x32xbf16>
    %330 = vector.shape_cast %326 : vector<8x32xbf16> to vector<1x8x32xbf16>
    tpu.vector_store %arg7[%327, %c0_109, %c0_110], %330 {strides = array<i32>} : memref<4x8x32xbf16, #tpu.memory_space<vmem>>, vector<1x8x32xbf16>,
    %c4_i32 = arith.constant 4 : i32
    %c0_111 = arith.constant 0 : index
    %c0_112 = arith.constant 0 : index
    %c0_113 = arith.constant 0 : index
    %331 = vector.load %arg10[%c0_111, %c0_112, %c0_113] : memref<2x8x32xf32, #tpu.memory_space<vmem>>, vector<1x8x32xf32>
    %332 = vector.shape_cast %331 : vector<1x8x32xf32> to vector<8x32xf32>
    %333 = vector.shape_cast %295 : vector<8x32xf32> to vector<1x8x32xf32>
    tpu.vector_store %arg10[%c0_111, %c0_112, %c0_113], %333 {strides = array<i32>} : memref<2x8x32xf32, #tpu.memory_space<vmem>>, vector<1x8x32xf32>,
    %c1_114 = arith.constant 1 : index
    %c0_115 = arith.constant 0 : index
    %c0_116 = arith.constant 0 : index
    %334 = vector.load %arg10[%c1_114, %c0_115, %c0_116] : memref<2x8x32xf32, #tpu.memory_space<vmem>>, vector<1x8x32xf32>
    %335 = vector.shape_cast %334 : vector<1x8x32xf32> to vector<8x32xf32>
    %336 = vector.shape_cast %320 : vector<8x32xf32> to vector<1x8x32xf32>
    tpu.vector_store %arg10[%c1_114, %c0_115, %c0_116], %336 {strides = array<i32>} : memref<2x8x32xf32, #tpu.memory_space<vmem>>, vector<1x8x32xf32>,
    %c0_117 = arith.constant 0 : index
    %c0_118 = arith.constant 0 : index
    %c0_119 = arith.constant 0 : index
    %337 = vector.load %arg11[%c0_117, %c0_118, %c0_119] : memref<2x8x32xf32, #tpu.memory_space<vmem>>, vector<1x8x32xf32>
    %338 = vector.shape_cast %337 : vector<1x8x32xf32> to vector<8x32xf32>
    %339 = vector.shape_cast %293 : vector<8x32xf32> to vector<1x8x32xf32>
    tpu.vector_store %arg11[%c0_117, %c0_118, %c0_119], %339 {strides = array<i32>} : memref<2x8x32xf32, #tpu.memory_space<vmem>>, vector<1x8x32xf32>,
    %c1_120 = arith.constant 1 : index
    %c0_121 = arith.constant 0 : index
    %c0_122 = arith.constant 0 : index
    %340 = vector.load %arg11[%c1_120, %c0_121, %c0_122] : memref<2x8x32xf32, #tpu.memory_space<vmem>>, vector<1x8x32xf32>
    %341 = vector.shape_cast %340 : vector<1x8x32xf32> to vector<8x32xf32>
    %342 = vector.shape_cast %318 : vector<8x32xf32> to vector<1x8x32xf32>
    tpu.vector_store %arg11[%c1_120, %c0_121, %c0_122], %342 {strides = array<i32>} : memref<2x8x32xf32, #tpu.memory_space<vmem>>, vector<1x8x32xf32>,
    return
  }
  func.func @transform_0(%arg0: i32) -> (i32, i32, i32) {
    %c0_i32 = arith.constant 0 : i32
    %c0_i32_0 = arith.constant 0 : i32
    %c0_i32_1 = arith.constant 0 : i32
    return %arg0, %c0_i32, %c0_i32_0 : i32, i32, i32
  }
  func.func @transform_1(%arg0: i32) -> (i32, i32, i32) {
    %c1_i32 = arith.constant 1 : i32
    %0 = arith.subi %c1_i32, %arg0 : i32
    %c0_i32 = arith.constant 0 : i32
    %c0_i32_0 = arith.constant 0 : i32
    %c0_i32_1 = arith.constant 0 : i32
    return %0, %c0_i32, %c0_i32_0 : i32, i32, i32
  }
  func.func @transform_2(%arg0: i32) -> (i32, i32, i32) {
    %c0_i32 = arith.constant 0 : i32
    %c0_i32_0 = arith.constant 0 : i32
    %c0_i32_1 = arith.constant 0 : i32
    %c0_i32_2 = arith.constant 0 : i32
    return %c0_i32, %c0_i32_0, %c0_i32_1 : i32, i32, i32
  }
  func.func @transform_3(%arg0: i32) -> (i32, i32, i32) {
    %c0_i32 = arith.constant 0 : i32
    %c0_i32_0 = arith.constant 0 : i32
    %c0_i32_1 = arith.constant 0 : i32
    %c0_i32_2 = arith.constant 0 : i32
    return %c0_i32, %c0_i32_0, %c0_i32_1 : i32, i32, i32
  }
  func.func @transform_4(%arg0: i32) -> (i32, i32, i32) {
    %c0_i32 = arith.constant 0 : i32
    %c0_i32_0 = arith.constant 0 : i32
    %c0_i32_1 = arith.constant 0 : i32
    %c0_i32_2 = arith.constant 0 : i32
    return %c0_i32, %c0_i32_0, %c0_i32_1 : i32, i32, i32
  }
  func.func @transform_5(%arg0: i32) -> (i32, i32, i32) {
    %c0_i32 = arith.constant 0 : i32
    %c0_i32_0 = arith.constant 0 : i32
    %c0_i32_1 = arith.constant 0 : i32
    return %arg0, %c0_i32, %c0_i32_0 : i32, i32, i32
  }
  func.func @transform_6(%arg0: i32) -> (i32, i32, i32) {
    %c1_i32 = arith.constant 1 : i32
    %0 = arith.subi %c1_i32, %arg0 : i32
    %c0_i32 = arith.constant 0 : i32
    %c0_i32_0 = arith.constant 0 : i32
    %c0_i32_1 = arith.constant 0 : i32
    return %0, %c0_i32, %c0_i32_0 : i32, i32, i32
  }
}

</mosaic_0001>

<llo_original>
// kernel: tpu_custom_call.1
$region0: #{tpu_custom_call.1}
  #allocation0 [shape = 'u32[]', space=smem, size = 0x4, offset = 0x4, fixed_abs, tag = 'smem constant byte address 0x4 - core index']
  #allocation1 [shape = 'u32[144,128]{1,0:T(1,128)}', space=vmem, size = 0x12000, scoped, tag = 'internal scratch']
  #allocation2 [shape = 'f32[4,8,128]{2,1,0:T(8,128)}', space=vmem, size = 0x4000, scoped, tag = 'scratch operand']
  #allocation3 [shape = 'f32[4,8,128]{2,1,0:T(8,128)}', space=vmem, size = 0x4000, scoped, tag = 'scratch operand']
  #allocation4 [shape = 'f32[2,8,32]{2,1,0:T(8,128)}', space=vmem, size = 0x2000, scoped, tag = 'scratch operand']
  #allocation5 [shape = 'f32[2,8,32]{2,1,0:T(8,128)}', space=vmem, size = 0x2000, scoped, tag = 'scratch operand']
  %s0 = inlined_call_operand.hbm [shape: f32[8,8,16], index: 0, kind: input, shape index: {}]
  %s1 = inlined_call_operand.hbm [shape: f32[8,8,16], index: 1, kind: input, shape index: {}]
  %s2 = inlined_call_operand.hbm [shape: bf16[2,16,128], index: 2, kind: input, shape index: {}]
  %s3 = inlined_call_operand.hbm [shape: f32[2,1,128], index: 3, kind: input, shape index: {}]
  %s4 = inlined_call_operand.hbm [shape: bf16[2,32,128], index: 4, kind: input, shape index: {}]
  %s5 = inlined_call_operand.hbm [shape: bf16[8,8,32], index: 5, kind: output, shape index: {0}]
  %s6 = inlined_call_operand.hbm [shape: bf16[8,8,32], index: 6, kind: output, shape index: {1}]
  %7 = xla_tuple %s5, %s6
  %s8 = sld [smem:[#allocation0]]
  $region85: #{tpu_custom_call.1} parent=0
    _
  %s10 = ssub.s32 1, %s8
  %s11 = scalar_select 0, %s10, %s8
  $region1: #{tpu_custom_call.1} parent=0
    #allocation6 [shape = 'u8[32768]{0}', space=vmem, size = 0x8000, scoped, tag = 'input window, operand 0']
    #allocation7 [shape = 's32[2]{0}', space=sflag, size = 0x8, scoped, tag = 'scoped memory for tpu_custom_call.1']
    #allocation8 [shape = 's32[2]{0}', space=sflag, size = 0x8, scoped, tag = 'scoped memory for tpu_custom_call.1']
    #allocation9 [shape = 'u8[32768]{0}', space=vmem, size = 0x8000, scoped, tag = 'input window, operand 1']
    #allocation10 [shape = 's32[2]{0}', space=sflag, size = 0x8, scoped, tag = 'scoped memory for tpu_custom_call.1']
    #allocation11 [shape = 'u8[8192]{0}', space=vmem, size = 0x2000, scoped, tag = 'input window, operand 2, single buffered']
    #allocation12 [shape = 'u8[1024]{0}', space=vmem, size = 0x400, scoped, tag = 'input window, operand 3, single buffered']
    #allocation13 [shape = 's32[1]{0}', space=sflag, size = 0x4, scoped, tag = 'scoped memory for tpu_custom_call.1']
    #allocation14 [shape = 'u8[16384]{0}', space=vmem, size = 0x4000, scoped, tag = 'input window, operand 4, single buffered']
    #allocation15 [shape = 'u8[16384]{0}', space=vmem, size = 0x4000, scoped, tag = 'output window, operand 0']
    #allocation16 [shape = 'u8[16384]{0}', space=vmem, size = 0x4000, scoped, tag = 'output window, operand 1']
    #allocation17 [shape = 's32[2]{0}', space=sflag, size = 0x8, scoped, tag = 'scoped memory for tpu_custom_call.1']
    %12 = vsyncpa [#allocation7], 0
    %s13 = scalar_lea.sflag [#allocation7], 1
    %14 = vsyncpa %s13, 0
    %15 = vsyncpa [#allocation10], 0
    %s16 = scalar_lea.sflag [#allocation10], 1
    %17 = vsyncpa %s16, 0
    %18 = vsyncpa [#allocation13], 0
    %19 = vsyncpa [#allocation8], 0
    %s20 = scalar_lea.sflag [#allocation8], 1
    %21 = vsyncpa %s20, 0
    %22 = vsyncpa [#allocation17], 0
    %s23 = scalar_lea.sflag [#allocation17], 1
    %24 = vsyncpa %s23, 0
    loop: start=0, step=1, limit=4
    $region2: #{tpu_custom_call.1} parent=1 // loop_pre_header
      _
    $region3: #{tpu_custom_call.1} parent=1 // loop_header
      %s26 = sphi 0, %s30
      %p27 = scmp.ge.s32.totalorder %s26, 4
      %s36 = sphi 0, %s38
      %s39 = sphi 0, %s36
      %s40 = sphi 0, %s39
      %s56 = sphi 0, %s40
      %s64 = sphi 0, %s66
      %s67 = sphi 0, %s64
      %s68 = sphi 0, %s67
      %s84 = sphi 0, %s68
      %s88 = sphi 0, %s88
      %s90 = sphi 0, %s88
      %s91 = sphi 0, %s90
      %s105 = sphi 0, %s91
      %s109 = sphi 0, %s109
      %s111 = sphi 0, %s109
      %s112 = sphi 0, %s111
      %s126 = sphi 0, %s112
      %s130 = sphi 0, %s130
      %s132 = sphi 0, %s130
      %s133 = sphi 0, %s132
      %s147 = sphi 0, %s133
      %s153 = sphi 0, %s155
      %s156 = sphi 0, %s153
      %s157 = sphi 0, %s156
      %s173 = sphi 0, %s157
      %s181 = sphi 0, %s183
      %s184 = sphi 0, %s181
      %s185 = sphi 0, %s184
      %s201 = sphi 0, %s185
    $region4: #{tpu_custom_call.1} parent=1 // loop_header_branch
      %29 = sbr.rel (%p27) target = $region8
    $region5: #{tpu_custom_call.1} parent=1 // loop_body
      %s31 = ssub.s32 %s26, 1
      %s32 = ssub.s32 %s26, 2
      %s33 = sadd.s32 %s26, 1
      %s34 = ssub.s32 %s26, %s33
      %p35 = scmp.eq.s32.totalorder %s34, 0
      %s37 = sadd.s32 %s36, 1
      %s38 = scalar_select %p35, %s36, %s37
      %p41 = pneg %p35
      %p42 = scmp.eq.s32.totalorder %s26, 1
      %p43 = por %p41, %p42
      %p44 = scmp.ne.s32.totalorder %s36, %s39
      %p45 = scmp.eq.s32.totalorder %s26, 0
      %p46 = por %p44, %p45
      %p47 = scmp.ne.s32.totalorder %s36, %s39
      %p48 = scmp.eq.s32.totalorder %s31, 1
      %p49 = por %p47, %p48
      %p50 = scmp.ne.s32.totalorder %s39, %s40
      %p51 = scmp.eq.s32.totalorder %s31, 0
      %p52 = por %p50, %p51
      %p53 = scmp.ne.s32.totalorder %s39, %s40
      %p54 = scmp.eq.s32.totalorder %s32, 1
      %p55 = por %p53, %p54
      %p57 = scmp.ne.s32.totalorder %s40, %s56
      %p58 = scmp.eq.s32.totalorder %s32, 0
      %p59 = por %p57, %p58
      %s60 = ssub.s32 1, %s26
      %s61 = ssub.s32 1, %s33
      %s62 = ssub.s32 %s60, %s61
      %p63 = scmp.eq.s32.totalorder %s62, 0
      %s65 = sadd.s32 %s64, 1
      %s66 = scalar_select %p63, %s64, %s65
      %p69 = pneg %p63
      %p70 = scmp.eq.s32.totalorder %s26, 1
      %p71 = por %p69, %p70
      %p72 = scmp.ne.s32.totalorder %s64, %s67
      %p73 = scmp.eq.s32.totalorder %s26, 0
      %p74 = por %p72, %p73
      %p75 = scmp.ne.s32.totalorder %s64, %s67
      %p76 = scmp.eq.s32.totalorder %s31, 1
      %p77 = por %p75, %p76
      %p78 = scmp.ne.s32.totalorder %s67, %s68
      %p79 = scmp.eq.s32.totalorder %s31, 0
      %p80 = por %p78, %p79
      %p81 = scmp.ne.s32.totalorder %s67, %s68
      %p82 = scmp.eq.s32.totalorder %s32, 1
      %p83 = por %p81, %p82
      %p85 = scmp.ne.s32.totalorder %s68, %s84
      %p86 = scmp.eq.s32.totalorder %s32, 0
      %p87 = por %p85, %p86
      %s89 = sadd.s32 %s88, 1
      %p92 = scmp.eq.s32.totalorder %s26, 1
      %p93 = scmp.ne.s32.totalorder %s88, %s90
      %p94 = scmp.eq.s32.totalorder %s26, 0
      %p95 = por %p93, %p94
      %p96 = scmp.ne.s32.totalorder %s88, %s90
      %p97 = scmp.eq.s32.totalorder %s31, 1
      %p98 = por %p96, %p97
      %p99 = scmp.ne.s32.totalorder %s90, %s91
      %p100 = scmp.eq.s32.totalorder %s31, 0
      %p101 = por %p99, %p100
      %p102 = scmp.ne.s32.totalorder %s90, %s91
      %p103 = scmp.eq.s32.totalorder %s32, 1
      %p104 = por %p102, %p103
      %p106 = scmp.ne.s32.totalorder %s91, %s105
      %p107 = scmp.eq.s32.totalorder %s32, 0
      %p108 = por %p106, %p107
      %s110 = sadd.s32 %s109, 1
      %p113 = scmp.eq.s32.totalorder %s26, 1
      %p114 = scmp.ne.s32.totalorder %s109, %s111
      %p115 = scmp.eq.s32.totalorder %s26, 0
      %p116 = por %p114, %p115
      %p117 = scmp.ne.s32.totalorder %s109, %s111
      %p118 = scmp.eq.s32.totalorder %s31, 1
      %p119 = por %p117, %p118
      %p120 = scmp.ne.s32.totalorder %s111, %s112
      %p121 = scmp.eq.s32.totalorder %s31, 0
      %p122 = por %p120, %p121
      %p123 = scmp.ne.s32.totalorder %s111, %s112
      %p124 = scmp.eq.s32.totalorder %s32, 1
      %p125 = por %p123, %p124
      %p127 = scmp.ne.s32.totalorder %s112, %s126
      %p128 = scmp.eq.s32.totalorder %s32, 0
      %p129 = por %p127, %p128
      %s131 = sadd.s32 %s130, 1
      %p134 = scmp.eq.s32.totalorder %s26, 1
      %p135 = scmp.ne.s32.totalorder %s130, %s132
      %p136 = scmp.eq.s32.totalorder %s26, 0
      %p137 = por %p135, %p136
      %p138 = scmp.ne.s32.totalorder %s130, %s132
      %p139 = scmp.eq.s32.totalorder %s31, 1
      %p140 = por %p138, %p139
      %p141 = scmp.ne.s32.totalorder %s132, %s133
      %p142 = scmp.eq.s32.totalorder %s31, 0
      %p143 = por %p141, %p142
      %p144 = scmp.ne.s32.totalorder %s132, %s133
      %p145 = scmp.eq.s32.totalorder %s32, 1
      %p146 = por %p144, %p145
      %p148 = scmp.ne.s32.totalorder %s133, %s147
      %p149 = scmp.eq.s32.totalorder %s32, 0
      %p150 = por %p148, %p149
      %s151 = ssub.s32 %s26, %s33
      %p152 = scmp.eq.s32.totalorder %s151, 0
      %s154 = sadd.s32 %s153, 1
      %s155 = scalar_select %p152, %s153, %s154
      %p158 = pneg %p152
      %p159 = scmp.eq.s32.totalorder %s26, 1
      %p160 = por %p158, %p159
      %p161 = scmp.ne.s32.totalorder %s153, %s156
      %p162 = scmp.eq.s32.totalorder %s26, 0
      %p163 = por %p161, %p162
      %p164 = scmp.ne.s32.totalorder %s153, %s156
      %p165 = scmp.eq.s32.totalorder %s31, 1
      %p166 = por %p164, %p165
      %p167 = scmp.ne.s32.totalorder %s156, %s157
      %p168 = scmp.eq.s32.totalorder %s31, 0
      %p169 = por %p167, %p168
      %p170 = scmp.ne.s32.totalorder %s156, %s157
      %p171 = scmp.eq.s32.totalorder %s32, 1
      %p172 = por %p170, %p171
      %p174 = scmp.ne.s32.totalorder %s157, %s173
      %p175 = scmp.eq.s32.totalorder %s32, 0
      %p176 = por %p174, %p175
      %s177 = ssub.s32 1, %s26
      %s178 = ssub.s32 1, %s33
      %s179 = ssub.s32 %s177, %s178
      %p180 = scmp.eq.s32.totalorder %s179, 0
      %s182 = sadd.s32 %s181, 1
      %s183 = scalar_select %p180, %s181, %s182
      %p186 = pneg %p180
      %p187 = scmp.eq.s32.totalorder %s26, 1
      %p188 = por %p186, %p187
      %p189 = scmp.ne.s32.totalorder %s181, %s184
      %p190 = scmp.eq.s32.totalorder %s26, 0
      %p191 = por %p189, %p190
      %p192 = scmp.ne.s32.totalorder %s181, %s184
      %p193 = scmp.eq.s32.totalorder %s31, 1
      %p194 = por %p192, %p193
      %p195 = scmp.ne.s32.totalorder %s184, %s185
      %p196 = scmp.eq.s32.totalorder %s31, 0
      %p197 = por %p195, %p196
      %p198 = scmp.ne.s32.totalorder %s184, %s185
      %p199 = scmp.eq.s32.totalorder %s32, 1
      %p200 = por %p198, %p199
      %p202 = scmp.ne.s32.totalorder %s185, %s201
      %p203 = scmp.eq.s32.totalorder %s32, 0
      %p204 = por %p202, %p203
      %p205 = scmp.le.s32.totalorder 1, %s26
      %p206 = scmp.lt.s32.totalorder %s26, 3
      %p207 = pnand %p205, %p206
      %p208 = pneg %p207
      // Predicated region
      $region9: #{tpu_custom_call.1} parent=5 // pred_check
        _
      $region10: #{tpu_custom_call.1} parent=5 // pred_check_branch
        %210 = sbr.rel (%p207) target = $region12
      $region11: #{tpu_custom_call.1} parent=5 // pred_region
        %s211 = ssub.s32 %s26, 1
        // Predicated region
        $region13: #{tpu_custom_call.1} parent=11 // pred_check
          %p212 = pneg %p101
        $region14: #{tpu_custom_call.1} parent=11 // pred_check_branch
          %214 = sbr.rel (%p212) target = $region16
        $region15: #{tpu_custom_call.1} parent=11 // pred_region
          %s216 = ssub.s32 256, 256
          %217 = vsyncadd [#allocation10], %s216
          %s218 = sshll.u32 [#allocation11], 4
          %s219 = int_to_ptr.vmem [resolvable:$true] %s218
          %224 = dma.hbm_to_vmem [thread:$0]  %s2, 256, %s219, [#allocation10], 64, 64, 4
        $region16: #{tpu_custom_call.1} parent=11 // pred_fallthru
          _
        // Predicated region
        $region17: #{tpu_custom_call.1} parent=11 // pred_check
          %p225 = pneg %p122
        $region18: #{tpu_custom_call.1} parent=11 // pred_check_branch
          %227 = sbr.rel (%p225) target = $region20
        $region19: #{tpu_custom_call.1} parent=11 // pred_region
          %s229 = ssub.s32 32, 32
          %230 = vsyncadd [#allocation13], %s229
          %s231 = sshll.u32 [#allocation12], 4
          %s232 = int_to_ptr.vmem [resolvable:$true] %s231
          %237 = dma.hbm_to_vmem [thread:$0]  %s3, 32, %s232, [#allocation13], 16, 16, 1
        $region20: #{tpu_custom_call.1} parent=11 // pred_fallthru
          _
        // Predicated region
        $region21: #{tpu_custom_call.1} parent=11 // pred_check
          %p238 = pneg %p143
        $region22: #{tpu_custom_call.1} parent=11 // pred_check_branch
          %240 = sbr.rel (%p238) target = $region24
        $region23: #{tpu_custom_call.1} parent=11 // pred_region
          %s242 = ssub.s32 512, 512
          %243 = vsyncadd [#allocation13], %s242
          %s244 = sshll.u32 [#allocation14], 4
          %s245 = int_to_ptr.vmem [resolvable:$true] %s244
          %250 = dma.hbm_to_vmem [thread:$0]  %s4, 512, %s245, [#allocation13], 64, 64, 4
        $region24: #{tpu_custom_call.1} parent=11 // pred_fallthru
          _
      $region12: #{tpu_custom_call.1} parent=5 // pred_fallthru
        _
      %p251 = scmp.lt.s32.totalorder %s26, 2
      // Predicated region
      $region25: #{tpu_custom_call.1} parent=5 // pred_check
        %p252 = pneg %p251
      $region26: #{tpu_custom_call.1} parent=5 // pred_check_branch
        %254 = sbr.rel (%p252) target = $region28
      $region27: #{tpu_custom_call.1} parent=5 // pred_region
        // Predicated region
        $region29: #{tpu_custom_call.1} parent=27 // pred_check
          %p255 = pneg %p46
        $region30: #{tpu_custom_call.1} parent=27 // pred_check_branch
          %257 = sbr.rel (%p255) target = $region32
        $region31: #{tpu_custom_call.1} parent=27 // pred_region
          %s258 = sand.u32 %s36, 1
          %s259 = scalar_lea.sflag [#allocation7], %s258
          %s260 = sand.u32 %s36, 1
          %s261 = smul.addr %s260, 32
          %s262 = scalar_lea.vmem [#allocation6], %s261
          %s263 = smul.u32 4, %s26
          %s265 = ssub.s32 512, 512
          %266 = vsyncadd %s259, %s265
          %s267 = smul.addr %s263, 128
          %s268 = scalar_lea.hbm %s0, %s267
          %s269 = sshll.u32 %s262, 4
          %s270 = int_to_ptr.vmem [resolvable:$true] %s269
          %275 = dma.hbm_to_vmem [thread:$0]  %s268, 512, %s270, %s259, 128, 128, 8
        $region32: #{tpu_custom_call.1} parent=27 // pred_fallthru
          _
        // Predicated region
        $region33: #{tpu_custom_call.1} parent=27 // pred_check
          %p276 = pneg %p74
        $region34: #{tpu_custom_call.1} parent=27 // pred_check_branch
          %278 = sbr.rel (%p276) target = $region36
        $region35: #{tpu_custom_call.1} parent=27 // pred_region
          %s279 = sand.u32 %s26, 1
          %s280 = scalar_lea.sflag [#allocation10], %s279
          %s281 = sand.u32 %s64, 1
          %s282 = smul.addr %s281, 32
          %s283 = scalar_lea.vmem [#allocation9], %s282
          %s284 = ssub.s32 1, %s26
          %s285 = smul.u32 4, %s284
          %s287 = ssub.s32 512, 512
          %288 = vsyncadd %s280, %s287
          %s289 = smul.addr %s285, 128
          %s290 = scalar_lea.hbm %s1, %s289
          %s291 = sshll.u32 %s283, 4
          %s292 = int_to_ptr.vmem [resolvable:$true] %s291
          %297 = dma.hbm_to_vmem [thread:$0]  %s290, 512, %s292, %s280, 128, 128, 8
        $region36: #{tpu_custom_call.1} parent=27 // pred_fallthru
          _
      $region28: #{tpu_custom_call.1} parent=5 // pred_fallthru
        _
      %p298 = scmp.le.s32.totalorder 1, %s26
      %p299 = scmp.lt.s32.totalorder %s26, 3
      %p300 = pnand %p298, %p299
      %p301 = pneg %p300
      // Predicated region
      $region37: #{tpu_custom_call.1} parent=5 // pred_check
        _
      $region38: #{tpu_custom_call.1} parent=5 // pred_check_branch
        %303 = sbr.rel (%p300) target = $region40
      $region39: #{tpu_custom_call.1} parent=5 // pred_region
        %s304 = ssub.s32 %s26, 1
        %s305 = sand.u32 %s39, 1
        %s306 = scalar_lea.sflag [#allocation7], %s305
        %s307 = sand.u32 %s39, 1
        %s308 = smul.addr %s307, 32
        %s309 = scalar_lea.vmem [#allocation6], %s308
        // Predicated region
        $region41: #{tpu_custom_call.1} parent=39 // pred_check
          %p310 = pneg %p52
        $region42: #{tpu_custom_call.1} parent=39 // pred_check_branch
          %312 = sbr.rel (%p310) target = $region44
        $region43: #{tpu_custom_call.1} parent=39 // pred_region
          %313 = dma.done %s306, 512
        $region44: #{tpu_custom_call.1} parent=39 // pred_fallthru
          _
        %s314 = sand.u32 %s31, 1
        %s315 = scalar_lea.sflag [#allocation10], %s314
        %s316 = sand.u32 %s67, 1
        %s317 = smul.addr %s316, 32
        %s318 = scalar_lea.vmem [#allocation9], %s317
        // Predicated region
        $region45: #{tpu_custom_call.1} parent=39 // pred_check
          %p319 = pneg %p80
        $region46: #{tpu_custom_call.1} parent=39 // pred_check_branch
          %321 = sbr.rel (%p319) target = $region48
        $region47: #{tpu_custom_call.1} parent=39 // pred_region
          %322 = dma.done %s315, 512
        $region48: #{tpu_custom_call.1} parent=39 // pred_fallthru
          _
        // Predicated region
        $region49: #{tpu_custom_call.1} parent=39 // pred_check
          %p323 = pneg %p101
        $region50: #{tpu_custom_call.1} parent=39 // pred_check_branch
          %325 = sbr.rel (%p323) target = $region52
        $region51: #{tpu_custom_call.1} parent=39 // pred_region
          %326 = dma.done [#allocation10], 256
        $region52: #{tpu_custom_call.1} parent=39 // pred_fallthru
          _
        // Predicated region
        $region53: #{tpu_custom_call.1} parent=39 // pred_check
          %p327 = pneg %p122
        $region54: #{tpu_custom_call.1} parent=39 // pred_check_branch
          %329 = sbr.rel (%p327) target = $region56
        $region55: #{tpu_custom_call.1} parent=39 // pred_region
          %330 = dma.done [#allocation13], 32
        $region56: #{tpu_custom_call.1} parent=39 // pred_fallthru
          _
        // Predicated region
        $region57: #{tpu_custom_call.1} parent=39 // pred_check
          %p331 = pneg %p143
        $region58: #{tpu_custom_call.1} parent=39 // pred_check_branch
          %333 = sbr.rel (%p331) target = $region60
        $region59: #{tpu_custom_call.1} parent=39 // pred_region
          %334 = dma.done [#allocation13], 512
        $region60: #{tpu_custom_call.1} parent=39 // pred_fallthru
          _
        %s335 = sand.u32 %s39, 1
        %s336 = scalar_lea.sflag [#allocation7], %s335
        %s337 = sand.u32 %s39, 1
        %s338 = smul.addr %s337, 32
        %s339 = scalar_lea.vmem [#allocation6], %s338
        %p340 = pneg %p52
        %p341 = pneg %p49
        %s342 = sand.u32 %s31, 1
        %s343 = scalar_lea.sflag [#allocation10], %s342
        %s344 = sand.u32 %s67, 1
        %s345 = smul.addr %s344, 32
        %s346 = scalar_lea.vmem [#allocation9], %s345
        %p347 = pneg %p80
        %p348 = pneg %p77
        %p349 = pneg %p101
        %p350 = pneg %p98
        %p351 = pneg %p122
        %p352 = pneg %p119
        %p353 = pneg %p143
        %p354 = pneg %p140
        %p355 = pneg %p169
        %p356 = pneg %p166
        %s357 = sand.u32 %s156, 1
        %s358 = scalar_lea.sflag [#allocation8], %s357
        %s359 = sand.u32 %s156, 1
        %s360 = smul.addr %s359, 16
        %s361 = scalar_lea.vmem [#allocation15], %s360
        %p362 = pneg %p197
        %p363 = pneg %p194
        %s364 = sand.u32 %s184, 1
        %s365 = scalar_lea.sflag [#allocation17], %s364
        %s366 = sand.u32 %s184, 1
        %s367 = smul.addr %s366, 16
        %s368 = scalar_lea.vmem [#allocation16], %s367
        %s369 = smul.u32 4, %s31
        %s370 = ssub.s32 1, %s31
        %s371 = smul.u32 4, %s370
        %s372 = smul.u32 4, %s31
        %s373 = ssub.s32 1, %s31
        %s374 = smul.u32 4, %s373
        %p376 = scmp.eq.s32.totalorder %s31, 0
        // Predicated region
        $region61: #{tpu_custom_call.1} parent=39 // pred_check
          %p377 = pneg %p376
        $region62: #{tpu_custom_call.1} parent=39 // pred_check_branch
          %379 = sbr.rel (%p377) target = $region64
        $region63: #{tpu_custom_call.1} parent=39 // pred_region
          %vm380 = vcmask 261120
          %381 = vst.msk [vmem:[#allocation4] sm:$0xff] %vm380, 0.0
          %382 = vst.msk [vmem:[#allocation4 + $0x8] sm:$0xff] %vm380, 0.0
          %383 = vst.msk [vmem:[#allocation5] sm:$0xff] %vm380, 0.0
          %384 = vst.msk [vmem:[#allocation5 + $0x8] sm:$0xff] %vm380, 0.0
        $region64: #{tpu_custom_call.1} parent=39 // pred_fallthru
          _
        %v385 = vld [vmem:[%s309] sm:$0xff]
        %v386 = vld [vmem:[%s309 + $0x8] sm:$0xff]
        %v387 = vld [vmem:[%s309 + $0x10] sm:$0xff]
        %v388 = vld [vmem:[%s309 + $0x18] sm:$0xff]
        %v389 = vpack.c.bf16 %v386, %v385
        %v390 = vpack.c.bf16 %v388, %v387
        %v391 = vld [vmem:[#allocation11] sm:$0xf]
        %v392 = vld [vmem:[#allocation11 + $0x4] sm:$0xf]
        %v393 = vld [vmem:[#allocation12] sm:$0x1]
        %v395 = vlaneseq
        %v396 = vshrl.u32 %v395, 7
        %v397 = vsub.s32 0, %v396
        %v398 = vrot.slane %v393, %v397
        %v402 = vunpack.c.l.b16 %v391
        %v403 = vunpack.c.l.b16 %v392
        %v404 = vpack.c.b16 %v403, %v402
        %vm406 = vcmask 130048
        %v408 = vsel %vm406, %v389, 0
        %v411 = vsel %vm406, %v390, 0
        %413 = vmatprep.subr.bf16.mxu0 0
        %414 = vmatpush1.bf16.msra.mxu0 %v404
        %415 = vmatprep.subr.bf16.mxu0 0
        %416 = vmatpush1.bf16.msra.mxu0 0
        %417 = vmatprep.subr.bf16.mxu0 0
        %418 = vmatpush1.bf16.msra.mxu0 0
        %419 = vmatprep.subr.bf16.mxu0 0
        %420 = vmatpush1.bf16.msra.mxu0 0
        %421 = vmatprep.subr.bf16.mxu0 0
        %422 = vmatpush1.bf16.msra.mxu0 0
        %423 = vmatprep.subr.bf16.mxu0 0
        %424 = vmatpush1.bf16.msra.mxu0 0
        %425 = vmatprep.subr.bf16.mxu0 0
        %426 = vmatpush1.bf16.msra.mxu0 0
        %427 = vmatprep.subr.bf16.mxu0 0
        %428 = vmatpush1.bf16.msra.mxu0 0
        %429 = vmatprep.subr.bf16.mxu0 0
        %430 = vmatpush1.bf16.msra.mxu0 0
        %431 = vmatprep.subr.bf16.mxu0 0
        %432 = vmatpush1.bf16.msra.mxu0 0
        %433 = vmatprep.subr.bf16.mxu0 0
        %434 = vmatpush1.bf16.msra.mxu0 0
        %435 = vmatprep.subr.bf16.mxu0 0
        %436 = vmatpush1.bf16.msra.mxu0 0
        %437 = vmatprep.subr.bf16.mxu0 0
        %438 = vmatpush1.bf16.msra.mxu0 0
        %439 = vmatprep.subr.bf16.mxu0 0
        %440 = vmatpush1.bf16.msra.mxu0 0
        %441 = vmatprep.subr.bf16.mxu0 0
        %442 = vmatpush1.bf16.msra.mxu0 0
        %443 = vmatprep.subr.bf16.mxu0 0
        %444 = vmatpush1.bf16.msra.mxu0 0
        %445 = vmatprep.mubr.bf16.mxu0 0
        %446 = vmatmul.mubr.bf16.gmra.mrb[0].mxu0 %v408
        %v447 = vpop.f32.mrb[0].mxu0
        %v448 = vadd.f32 %v398, %v447
        %v449 = vpop.f32.mrb[0].mxu0
        %v450 = vpop.f32.mrb[0].mxu0
        %v451 = vadd.f32 %v398, %v450
        %v452 = vpop.f32.mrb[0].mxu0
        %453 = vmatprep.mubr.bf16.mxu0 0
        %454 = vmatmul.mubr.bf16.gmra.mrb[0].mxu0 %v411
        %v455 = vpop.f32.mrb[0].mxu0
        %v456 = vadd.f32 %v398, %v455
        %v457 = vpop.f32.mrb[0].mxu0
        %v458 = vpop.f32.mrb[0].mxu0
        %v459 = vadd.f32 %v398, %v458
        %v460 = vpop.f32.mrb[0].mxu0
        %461 = vdwg.mxu0
        %462 = vst [vmem:[#allocation2] sm:$0xff] %v448
        %463 = vst [vmem:[#allocation2 + $0x8] sm:$0xff] %v451
        %464 = vst [vmem:[#allocation2 + $0x10] sm:$0xff] %v456
        %465 = vst [vmem:[#allocation2 + $0x18] sm:$0xff] %v459
        %v466 = vld [vmem:[%s318] sm:$0xff]
        %v467 = vld [vmem:[%s318 + $0x8] sm:$0xff]
        %v468 = vld [vmem:[%s318 + $0x10] sm:$0xff]
        %v469 = vld [vmem:[%s318 + $0x18] sm:$0xff]
        %v470 = vpack.c.bf16 %v467, %v466
        %v471 = vpack.c.bf16 %v469, %v468
        %s472 = scalar_lea.vmem [#allocation11], 8
        %v473 = vld [vmem:[%s472] sm:$0xf]
        %v474 = vld [vmem:[%s472 + $0x4] sm:$0xf]
        %s475 = scalar_lea.vmem [#allocation12], 1
        %v476 = vld [vmem:[%s475] sm:$0x1]
        %v478 = vlaneseq
        %v479 = vshrl.u32 %v478, 7
        %v480 = vsub.s32 0, %v479
        %v481 = vrot.slane %v476, %v480
        %v485 = vunpack.c.l.b16 %v473
        %v486 = vunpack.c.l.b16 %v474
        %v487 = vpack.c.b16 %v486, %v485
        %v490 = vsel %vm406, %v470, 0
        %v493 = vsel %vm406, %v471, 0
        %495 = vmatprep.subr.bf16.mxu0 0
        %496 = vmatpush1.bf16.msra.mxu0 %v487
        %497 = vmatprep.subr.bf16.mxu0 0
        %498 = vmatpush1.bf16.msra.mxu0 0
        %499 = vmatprep.subr.bf16.mxu0 0
        %500 = vmatpush1.bf16.msra.mxu0 0
        %501 = vmatprep.subr.bf16.mxu0 0
        %502 = vmatpush1.bf16.msra.mxu0 0
        %503 = vmatprep.subr.bf16.mxu0 0
        %504 = vmatpush1.bf16.msra.mxu0 0
        %505 = vmatprep.subr.bf16.mxu0 0
        %506 = vmatpush1.bf16.msra.mxu0 0
        %507 = vmatprep.subr.bf16.mxu0 0
        %508 = vmatpush1.bf16.msra.mxu0 0
        %509 = vmatprep.subr.bf16.mxu0 0
        %510 = vmatpush1.bf16.msra.mxu0 0
        %511 = vmatprep.subr.bf16.mxu0 0
        %512 = vmatpush1.bf16.msra.mxu0 0
        %513 = vmatprep.subr.bf16.mxu0 0
        %514 = vmatpush1.bf16.msra.mxu0 0
        %515 = vmatprep.subr.bf16.mxu0 0
        %516 = vmatpush1.bf16.msra.mxu0 0
        %517 = vmatprep.subr.bf16.mxu0 0
        %518 = vmatpush1.bf16.msra.mxu0 0
        %519 = vmatprep.subr.bf16.mxu0 0
        %520 = vmatpush1.bf16.msra.mxu0 0
        %521 = vmatprep.subr.bf16.mxu0 0
        %522 = vmatpush1.bf16.msra.mxu0 0
        %523 = vmatprep.subr.bf16.mxu0 0
        %524 = vmatpush1.bf16.msra.mxu0 0
        %525 = vmatprep.subr.bf16.mxu0 0
        %526 = vmatpush1.bf16.msra.mxu0 0
        %527 = vmatprep.mubr.bf16.mxu0 0
        %528 = vmatmul.mubr.bf16.gmra.mrb[0].mxu0 %v490
        %v529 = vpop.f32.mrb[0].mxu0
        %v530 = vadd.f32 %v481, %v529
        %v531 = vpop.f32.mrb[0].mxu0
        %v532 = vpop.f32.mrb[0].mxu0
        %v533 = vadd.f32 %v481, %v532
        %v534 = vpop.f32.mrb[0].mxu0
        %535 = vmatprep.mubr.bf16.mxu0 0
        %536 = vmatmul.mubr.bf16.gmra.mrb[0].mxu0 %v493
        %v537 = vpop.f32.mrb[0].mxu0
        %v538 = vadd.f32 %v481, %v537
        %v539 = vpop.f32.mrb[0].mxu0
        %v540 = vpop.f32.mrb[0].mxu0
        %v541 = vadd.f32 %v481, %v540
        %v542 = vpop.f32.mrb[0].mxu0
        %543 = vdwg.mxu0
        %544 = vst [vmem:[#allocation3] sm:$0xff] %v530
        %545 = vst [vmem:[#allocation3 + $0x8] sm:$0xff] %v533
        %546 = vst [vmem:[#allocation3 + $0x10] sm:$0xff] %v538
        %547 = vst [vmem:[#allocation3 + $0x18] sm:$0xff] %v541
        %v548 = vld [vmem:[#allocation14] sm:$0xf]
        %v549 = vld [vmem:[#allocation14 + $0x4] sm:$0xf]
        %v550 = vld [vmem:[#allocation14 + $0x8] sm:$0xf]
        %v551 = vld [vmem:[#allocation14 + $0xc] sm:$0xf]
        %s552 = scalar_lea.vmem [#allocation14], 16
        %v553 = vld [vmem:[%s552] sm:$0xf]
        %v554 = vld [vmem:[%s552 + $0x4] sm:$0xf]
        %v555 = vld [vmem:[%s552 + $0x8] sm:$0xf]
        %v556 = vld [vmem:[%s552 + $0xc] sm:$0xf]
        %v557 = vld [vmem:[#allocation4] sm:$0xff]
        %s558 = scalar_lea.vmem [#allocation4], 8
        %v559 = vld [vmem:[%s558] sm:$0xff]
        %v560 = vld [vmem:[#allocation5] sm:$0xff]
        %s561 = scalar_lea.vmem [#allocation5], 8
        %v562 = vld [vmem:[%s561] sm:$0xff]
        %v563 = vpack.c.bf16 %v557, %v557
        %v568 = vunpack.c.l.b16 %v548
        %v569 = vunpack.c.l.b16 %v549
        %v570 = vunpack.c.l.b16 %v550
        %v571 = vunpack.c.l.b16 %v551
        %v572 = vpack.c.b16 %v569, %v568
        %v573 = vpack.c.b16 %v571, %v570
        %vm576 = vcmask 261120
        %v578 = vsel %vm576, %v563, 0
        %580 = vmatprep.subr.bf16.mxu0 0
        %581 = vmatpush1.bf16.msra.mxu0 %v572
        %582 = vmatprep.subr.bf16.mxu0 0
        %583 = vmatpush1.bf16.msra.mxu0 %v573
        %584 = vmatprep.subr.bf16.mxu0 0
        %585 = vmatpush1.bf16.msra.mxu0 0
        %586 = vmatprep.subr.bf16.mxu0 0
        %587 = vmatpush1.bf16.msra.mxu0 0
        %588 = vmatprep.subr.bf16.mxu0 0
        %589 = vmatpush1.bf16.msra.mxu0 0
        %590 = vmatprep.subr.bf16.mxu0 0
        %591 = vmatpush1.bf16.msra.mxu0 0
        %592 = vmatprep.subr.bf16.mxu0 0
        %593 = vmatpush1.bf16.msra.mxu0 0
        %594 = vmatprep.subr.bf16.mxu0 0
        %595 = vmatpush1.bf16.msra.mxu0 0
        %596 = vmatprep.subr.bf16.mxu0 0
        %597 = vmatpush1.bf16.msra.mxu0 0
        %598 = vmatprep.subr.bf16.mxu0 0
        %599 = vmatpush1.bf16.msra.mxu0 0
        %600 = vmatprep.subr.bf16.mxu0 0
        %601 = vmatpush1.bf16.msra.mxu0 0
        %602 = vmatprep.subr.bf16.mxu0 0
        %603 = vmatpush1.bf16.msra.mxu0 0
        %604 = vmatprep.subr.bf16.mxu0 0
        %605 = vmatpush1.bf16.msra.mxu0 0
        %606 = vmatprep.subr.bf16.mxu0 0
        %607 = vmatpush1.bf16.msra.mxu0 0
        %608 = vmatprep.subr.bf16.mxu0 0
        %609 = vmatpush1.bf16.msra.mxu0 0
        %610 = vmatprep.subr.bf16.mxu0 0
        %611 = vmatpush1.bf16.msra.mxu0 0
        %612 = vmatprep.mubr.bf16.mxu0 0
        %613 = vmatmul.mubr.bf16.gmra.mrb[0].mxu0 %v578
        %v614 = vpop.f32.mrb[0].mxu0
        %v615 = vadd.f32 0.0, %v614
        %v616 = vpop.f32.mrb[0].mxu0
        %v617 = vpop.f32.mrb[0].mxu0
        %v618 = vpop.f32.mrb[0].mxu0
        %619 = vdwg.mxu0
        %v620 = vpack.c.bf16 %v559, %v559
        %v625 = vunpack.c.l.b16 %v553
        %v626 = vunpack.c.l.b16 %v554
        %v627 = vunpack.c.l.b16 %v555
        %v628 = vunpack.c.l.b16 %v556
        %v629 = vpack.c.b16 %v626, %v625
        %v630 = vpack.c.b16 %v628, %v627
        %v634 = vsel %vm576, %v620, 0
        %636 = vmatprep.subr.bf16.mxu0 0
        %637 = vmatpush1.bf16.msra.mxu0 %v629
        %638 = vmatprep.subr.bf16.mxu0 0
        %639 = vmatpush1.bf16.msra.mxu0 %v630
        %640 = vmatprep.subr.bf16.mxu0 0
        %641 = vmatpush1.bf16.msra.mxu0 0
        %642 = vmatprep.subr.bf16.mxu0 0
        %643 = vmatpush1.bf16.msra.mxu0 0
        %644 = vmatprep.subr.bf16.mxu0 0
        %645 = vmatpush1.bf16.msra.mxu0 0
        %646 = vmatprep.subr.bf16.mxu0 0
        %647 = vmatpush1.bf16.msra.mxu0 0
        %648 = vmatprep.subr.bf16.mxu0 0
        %649 = vmatpush1.bf16.msra.mxu0 0
        %650 = vmatprep.subr.bf16.mxu0 0
        %651 = vmatpush1.bf16.msra.mxu0 0
        %652 = vmatprep.subr.bf16.mxu0 0
        %653 = vmatpush1.bf16.msra.mxu0 0
        %654 = vmatprep.subr.bf16.mxu0 0
        %655 = vmatpush1.bf16.msra.mxu0 0
        %656 = vmatprep.subr.bf16.mxu0 0
        %657 = vmatpush1.bf16.msra.mxu0 0
        %658 = vmatprep.subr.bf16.mxu0 0
        %659 = vmatpush1.bf16.msra.mxu0 0
        %660 = vmatprep.subr.bf16.mxu0 0
        %661 = vmatpush1.bf16.msra.mxu0 0
        %662 = vmatprep.subr.bf16.mxu0 0
        %663 = vmatpush1.bf16.msra.mxu0 0
        %664 = vmatprep.subr.bf16.mxu0 0
        %665 = vmatpush1.bf16.msra.mxu0 0
        %666 = vmatprep.subr.bf16.mxu0 0
        %667 = vmatpush1.bf16.msra.mxu0 0
        %668 = vmatprep.mubr.bf16.mxu0 0
        %669 = vmatmul.mubr.bf16.gmra.mrb[0].mxu0 %v634
        %v670 = vpop.f32.mrb[0].mxu0
        %v671 = vadd.f32 0.0, %v670
        %v672 = vpop.f32.mrb[0].mxu0
        %v673 = vpop.f32.mrb[0].mxu0
        %v674 = vpop.f32.mrb[0].mxu0
        %675 = vdwg.mxu0
        %v676 = vld [vmem:[#allocation2] sm:$0xff]
        %v677 = vadd.f32 %v676, %v615
        %s678 = scalar_lea.vmem [#allocation3], 24
        %v679 = vld [vmem:[%s678] sm:$0xff]
        %v680 = vadd.f32 %v679, %v671
        %v681 = vxor.u32 %v677, 2147483648
        %v682 = vmul.f32 %v681, 1.442695
        %v683 = vpow.pop %v682
        %v684 = vadd.f32 %v683, 1.0
        %v685 = vrcp.pop %v684
        %v686 = vmul.f32 1.0, %v685
        %v687 = vtanh.pop %v677
        %689 = vrot.lane.b32.xlu0 %v560, 32
        %v690 = vpop.permute.xlu0 %689
        %v692 = vmul.f32 %v686, %v690
        %694 = vrot.lane.b32.xlu0 %v687, 64
        %v695 = vpop.permute.xlu0 %694
        %v697 = vmul.f32 %v686, %v695
        %699 = vrot.lane.b32.xlu0 %v697, 32
        %v700 = vpop.permute.xlu0 %699
        %v702 = vadd.f32 %v692, %v700
        %v703 = vtanh.pop %v702
        %705 = vrot.lane.b32.xlu0 %v703, 64
        %v706 = vpop.permute.xlu0 %705
        %v708 = vmul.f32 %v686, %v706
        %v709 = vxor.u32 %v680, 2147483648
        %v710 = vmul.f32 %v709, 1.442695
        %v711 = vpow.pop %v710
        %v712 = vadd.f32 %v711, 1.0
        %v713 = vrcp.pop %v712
        %v714 = vmul.f32 1.0, %v713
        %v715 = vtanh.pop %v680
        %717 = vrot.lane.b32.xlu0 %v562, 32
        %v718 = vpop.permute.xlu0 %717
        %v720 = vmul.f32 %v714, %v718
        %722 = vrot.lane.b32.xlu0 %v715, 64
        %v723 = vpop.permute.xlu0 %722
        %v725 = vmul.f32 %v714, %v723
        %727 = vrot.lane.b32.xlu0 %v725, 32
        %v728 = vpop.permute.xlu0 %727
        %v730 = vadd.f32 %v720, %v728
        %v731 = vtanh.pop %v730
        %733 = vrot.lane.b32.xlu0 %v731, 64
        %v734 = vpop.permute.xlu0 %733
        %v736 = vmul.f32 %v714, %v734
        %v737 = vpack.c.bf16 %v708, %v708
        %v739 = vunpack.c.l.b16 %v737
        %v740 = vpack.c.b16 %v739, %v739
        %741 = vrot.lane.b32.xlu0 %v740, 32
        %v742 = vpop.permute.xlu0 %741
        %vm744 = vcmask 257024
        %745 = vst.msk [vmem:[%s361] sm:$0xf] %vm744, %v742
        %v746 = vpack.c.bf16 %v736, %v736
        %v748 = vunpack.c.l.b16 %v746
        %v749 = vpack.c.b16 %v748, %v748
        %750 = vrot.lane.b32.xlu0 %v749, 32
        %v751 = vpop.permute.xlu0 %750
        %s753 = scalar_lea.vmem %s368, 12 [#allocation16]
        %754 = vst.msk [vmem:[%s753] sm:$0xf] %vm744, %v751
        %755 = vrot.lane.b32.xlu0 %v737, 32
        %v756 = vpop.permute.xlu0 %755
        %v758 = vsel %vm576, %v756, 0
        %760 = vmatprep.subr.bf16.mxu0 0
        %761 = vmatpush1.bf16.msra.mxu0 %v572
        %762 = vmatprep.subr.bf16.mxu0 0
        %763 = vmatpush1.bf16.msra.mxu0 %v573
        %764 = vmatprep.subr.bf16.mxu0 0
        %765 = vmatpush1.bf16.msra.mxu0 0
        %766 = vmatprep.subr.bf16.mxu0 0
        %767 = vmatpush1.bf16.msra.mxu0 0
        %768 = vmatprep.subr.bf16.mxu0 0
        %769 = vmatpush1.bf16.msra.mxu0 0
        %770 = vmatprep.subr.bf16.mxu0 0
        %771 = vmatpush1.bf16.msra.mxu0 0
        %772 = vmatprep.subr.bf16.mxu0 0
        %773 = vmatpush1.bf16.msra.mxu0 0
        %774 = vmatprep.subr.bf16.mxu0 0
        %775 = vmatpush1.bf16.msra.mxu0 0
        %776 = vmatprep.subr.bf16.mxu0 0
        %777 = vmatpush1.bf16.msra.mxu0 0
        %778 = vmatprep.subr.bf16.mxu0 0
        %779 = vmatpush1.bf16.msra.mxu0 0
        %780 = vmatprep.subr.bf16.mxu0 0
        %781 = vmatpush1.bf16.msra.mxu0 0
        %782 = vmatprep.subr.bf16.mxu0 0
        %783 = vmatpush1.bf16.msra.mxu0 0
        %784 = vmatprep.subr.bf16.mxu0 0
        %785 = vmatpush1.bf16.msra.mxu0 0
        %786 = vmatprep.subr.bf16.mxu0 0
        %787 = vmatpush1.bf16.msra.mxu0 0
        %788 = vmatprep.subr.bf16.mxu0 0
        %789 = vmatpush1.bf16.msra.mxu0 0
        %790 = vmatprep.subr.bf16.mxu0 0
        %791 = vmatpush1.bf16.msra.mxu0 0
        %792 = vmatprep.mubr.bf16.mxu0 0
        %793 = vmatmul.mubr.bf16.gmra.mrb[0].mxu0 %v758
        %v794 = vpop.f32.mrb[0].mxu0
        %v795 = vadd.f32 0.0, %v794
        %v796 = vpop.f32.mrb[0].mxu0
        %v797 = vpop.f32.mrb[0].mxu0
        %v798 = vpop.f32.mrb[0].mxu0
        %799 = vdwg.mxu0
        %800 = vrot.lane.b32.xlu0 %v746, 32
        %v801 = vpop.permute.xlu0 %800
        %v803 = vsel %vm576, %v801, 0
        %805 = vmatprep.subr.bf16.mxu0 0
        %806 = vmatpush1.bf16.msra.mxu0 %v629
        %807 = vmatprep.subr.bf16.mxu0 0
        %808 = vmatpush1.bf16.msra.mxu0 %v630
        %809 = vmatprep.subr.bf16.mxu0 0
        %810 = vmatpush1.bf16.msra.mxu0 0
        %811 = vmatprep.subr.bf16.mxu0 0
        %812 = vmatpush1.bf16.msra.mxu0 0
        %813 = vmatprep.subr.bf16.mxu0 0
        %814 = vmatpush1.bf16.msra.mxu0 0
        %815 = vmatprep.subr.bf16.mxu0 0
        %816 = vmatpush1.bf16.msra.mxu0 0
        %817 = vmatprep.subr.bf16.mxu0 0
        %818 = vmatpush1.bf16.msra.mxu0 0
        %819 = vmatprep.subr.bf16.mxu0 0
        %820 = vmatpush1.bf16.msra.mxu0 0
        %821 = vmatprep.subr.bf16.mxu0 0
        %822 = vmatpush1.bf16.msra.mxu0 0
        %823 = vmatprep.subr.bf16.mxu0 0
        %824 = vmatpush1.bf16.msra.mxu0 0
        %825 = vmatprep.subr.bf16.mxu0 0
        %826 = vmatpush1.bf16.msra.mxu0 0
        %827 = vmatprep.subr.bf16.mxu0 0
        %828 = vmatpush1.bf16.msra.mxu0 0
        %829 = vmatprep.subr.bf16.mxu0 0
        %830 = vmatpush1.bf16.msra.mxu0 0
        %831 = vmatprep.subr.bf16.mxu0 0
        %832 = vmatpush1.bf16.msra.mxu0 0
        %833 = vmatprep.subr.bf16.mxu0 0
        %834 = vmatpush1.bf16.msra.mxu0 0
        %835 = vmatprep.subr.bf16.mxu0 0
        %836 = vmatpush1.bf16.msra.mxu0 0
        %837 = vmatprep.mubr.bf16.mxu0 0
        %838 = vmatmul.mubr.bf16.gmra.mrb[0].mxu0 %v803
        %v839 = vpop.f32.mrb[0].mxu0
        %v840 = vadd.f32 0.0, %v839
        %v841 = vpop.f32.mrb[0].mxu0
        %v842 = vpop.f32.mrb[0].mxu0
        %v843 = vpop.f32.mrb[0].mxu0
        %844 = vdwg.mxu0
        %s845 = scalar_lea.vmem [#allocation2], 8
        %v846 = vld [vmem:[%s845] sm:$0xff]
        %v847 = vadd.f32 %v846, %v795
        %s848 = scalar_lea.vmem [#allocation3], 16
        %v849 = vld [vmem:[%s848] sm:$0xff]
        %v850 = vadd.f32 %v849, %v840
        %v851 = vxor.u32 %v847, 2147483648
        %v852 = vmul.f32 %v851, 1.442695
        %v853 = vpow.pop %v852
        %v854 = vadd.f32 %v853, 1.0
        %v855 = vrcp.pop %v854
        %v856 = vmul.f32 1.0, %v855
        %v857 = vtanh.pop %v847
        %v858 = vmul.f32 %v856, %v702
        %860 = vrot.lane.b32.xlu0 %v857, 64
        %v861 = vpop.permute.xlu0 %860
        %v863 = vmul.f32 %v856, %v861
        %865 = vrot.lane.b32.xlu0 %v863, 32
        %v866 = vpop.permute.xlu0 %865
        %v868 = vadd.f32 %v858, %v866
        %v869 = vtanh.pop %v868
        %871 = vrot.lane.b32.xlu0 %v869, 64
        %v872 = vpop.permute.xlu0 %871
        %v874 = vmul.f32 %v856, %v872
        %v875 = vxor.u32 %v850, 2147483648
        %v876 = vmul.f32 %v875, 1.442695
        %v877 = vpow.pop %v876
        %v878 = vadd.f32 %v877, 1.0
        %v879 = vrcp.pop %v878
        %v880 = vmul.f32 1.0, %v879
        %v881 = vtanh.pop %v850
        %v882 = vmul.f32 %v880, %v730
        %884 = vrot.lane.b32.xlu0 %v881, 64
        %v885 = vpop.permute.xlu0 %884
        %v887 = vmul.f32 %v880, %v885
        %889 = vrot.lane.b32.xlu0 %v887, 32
        %v890 = vpop.permute.xlu0 %889
        %v892 = vadd.f32 %v882, %v890
        %v893 = vtanh.pop %v892
        %895 = vrot.lane.b32.xlu0 %v893, 64
        %v896 = vpop.permute.xlu0 %895
        %v898 = vmul.f32 %v880, %v896
        %v899 = vpack.c.bf16 %v874, %v874
        %v901 = vunpack.c.l.b16 %v899
        %v902 = vpack.c.b16 %v901, %v901
        %903 = vrot.lane.b32.xlu0 %v902, 32
        %v904 = vpop.permute.xlu0 %903
        %s906 = scalar_lea.vmem %s361, 4 [#allocation15]
        %907 = vst.msk [vmem:[%s906] sm:$0xf] %vm744, %v904
        %v908 = vpack.c.bf16 %v898, %v898
        %v910 = vunpack.c.l.b16 %v908
        %v911 = vpack.c.b16 %v910, %v910
        %912 = vrot.lane.b32.xlu0 %v911, 32
        %v913 = vpop.permute.xlu0 %912
        %s915 = scalar_lea.vmem %s368, 8 [#allocation16]
        %916 = vst.msk [vmem:[%s915] sm:$0xf] %vm744, %v913
        %917 = vrot.lane.b32.xlu0 %v899, 32
        %v918 = vpop.permute.xlu0 %917
        %v920 = vsel %vm576, %v918, 0
        %922 = vmatprep.subr.bf16.mxu0 0
        %923 = vmatpush1.bf16.msra.mxu0 %v572
        %924 = vmatprep.subr.bf16.mxu0 0
        %925 = vmatpush1.bf16.msra.mxu0 %v573
        %926 = vmatprep.subr.bf16.mxu0 0
        %927 = vmatpush1.bf16.msra.mxu0 0
        %928 = vmatprep.subr.bf16.mxu0 0
        %929 = vmatpush1.bf16.msra.mxu0 0
        %930 = vmatprep.subr.bf16.mxu0 0
        %931 = vmatpush1.bf16.msra.mxu0 0
        %932 = vmatprep.subr.bf16.mxu0 0
        %933 = vmatpush1.bf16.msra.mxu0 0
        %934 = vmatprep.subr.bf16.mxu0 0
        %935 = vmatpush1.bf16.msra.mxu0 0
        %936 = vmatprep.subr.bf16.mxu0 0
        %937 = vmatpush1.bf16.msra.mxu0 0
        %938 = vmatprep.subr.bf16.mxu0 0
        %939 = vmatpush1.bf16.msra.mxu0 0
        %940 = vmatprep.subr.bf16.mxu0 0
        %941 = vmatpush1.bf16.msra.mxu0 0
        %942 = vmatprep.subr.bf16.mxu0 0
        %943 = vmatpush1.bf16.msra.mxu0 0
        %944 = vmatprep.subr.bf16.mxu0 0
        %945 = vmatpush1.bf16.msra.mxu0 0
        %946 = vmatprep.subr.bf16.mxu0 0
        %947 = vmatpush1.bf16.msra.mxu0 0
        %948 = vmatprep.subr.bf16.mxu0 0
        %949 = vmatpush1.bf16.msra.mxu0 0
        %950 = vmatprep.subr.bf16.mxu0 0
        %951 = vmatpush1.bf16.msra.mxu0 0
        %952 = vmatprep.subr.bf16.mxu0 0
        %953 = vmatpush1.bf16.msra.mxu0 0
        %954 = vmatprep.mubr.bf16.mxu0 0
        %955 = vmatmul.mubr.bf16.gmra.mrb[0].mxu0 %v920
        %v956 = vpop.f32.mrb[0].mxu0
        %v957 = vadd.f32 0.0, %v956
        %v958 = vpop.f32.mrb[0].mxu0
        %v959 = vpop.f32.mrb[0].mxu0
        %v960 = vpop.f32.mrb[0].mxu0
        %961 = vdwg.mxu0
        %962 = vrot.lane.b32.xlu0 %v908, 32
        %v963 = vpop.permute.xlu0 %962
        %v965 = vsel %vm576, %v963, 0
        %967 = vmatprep.subr.bf16.mxu0 0
        %968 = vmatpush1.bf16.msra.mxu0 %v629
        %969 = vmatprep.subr.bf16.mxu0 0
        %970 = vmatpush1.bf16.msra.mxu0 %v630
        %971 = vmatprep.subr.bf16.mxu0 0
        %972 = vmatpush1.bf16.msra.mxu0 0
        %973 = vmatprep.subr.bf16.mxu0 0
        %974 = vmatpush1.bf16.msra.mxu0 0
        %975 = vmatprep.subr.bf16.mxu0 0
        %976 = vmatpush1.bf16.msra.mxu0 0
        %977 = vmatprep.subr.bf16.mxu0 0
        %978 = vmatpush1.bf16.msra.mxu0 0
        %979 = vmatprep.subr.bf16.mxu0 0
        %980 = vmatpush1.bf16.msra.mxu0 0
        %981 = vmatprep.subr.bf16.mxu0 0
        %982 = vmatpush1.bf16.msra.mxu0 0
        %983 = vmatprep.subr.bf16.mxu0 0
        %984 = vmatpush1.bf16.msra.mxu0 0
        %985 = vmatprep.subr.bf16.mxu0 0
        %986 = vmatpush1.bf16.msra.mxu0 0
        %987 = vmatprep.subr.bf16.mxu0 0
        %988 = vmatpush1.bf16.msra.mxu0 0
        %989 = vmatprep.subr.bf16.mxu0 0
        %990 = vmatpush1.bf16.msra.mxu0 0
        %991 = vmatprep.subr.bf16.mxu0 0
        %992 = vmatpush1.bf16.msra.mxu0 0
        %993 = vmatprep.subr.bf16.mxu0 0
        %994 = vmatpush1.bf16.msra.mxu0 0
        %995 = vmatprep.subr.bf16.mxu0 0
        %996 = vmatpush1.bf16.msra.mxu0 0
        %997 = vmatprep.subr.bf16.mxu0 0
        %998 = vmatpush1.bf16.msra.mxu0 0
        %999 = vmatprep.mubr.bf16.mxu0 0
        %1000 = vmatmul.mubr.bf16.gmra.mrb[0].mxu0 %v965
        %v1001 = vpop.f32.mrb[0].mxu0
        %v1002 = vadd.f32 0.0, %v1001
        %v1003 = vpop.f32.mrb[0].mxu0
        %v1004 = vpop.f32.mrb[0].mxu0
        %v1005 = vpop.f32.mrb[0].mxu0
        %1006 = vdwg.mxu0
        %s1007 = scalar_lea.vmem [#allocation2], 16
        %v1008 = vld [vmem:[%s1007] sm:$0xff]
        %v1009 = vadd.f32 %v1008, %v957
        %s1010 = scalar_lea.vmem [#allocation3], 8
        %v1011 = vld [vmem:[%s1010] sm:$0xff]
        %v1012 = vadd.f32 %v1011, %v1002
        %v1013 = vxor.u32 %v1009, 2147483648
        %v1014 = vmul.f32 %v1013, 1.442695
        %v1015 = vpow.pop %v1014
        %v1016 = vadd.f32 %v1015, 1.0
        %v1017 = vrcp.pop %v1016
        %v1018 = vmul.f32 1.0, %v1017
        %v1019 = vtanh.pop %v1009
        %v1020 = vmul.f32 %v1018, %v868
        %1022 = vrot.lane.b32.xlu0 %v1019, 64
        %v1023 = vpop.permute.xlu0 %1022
        %v1025 = vmul.f32 %v1018, %v1023
        %1027 = vrot.lane.b32.xlu0 %v1025, 32
        %v1028 = vpop.permute.xlu0 %1027
        %v1030 = vadd.f32 %v1020, %v1028
        %v1031 = vtanh.pop %v1030
        %1033 = vrot.lane.b32.xlu0 %v1031, 64
        %v1034 = vpop.permute.xlu0 %1033
        %v1036 = vmul.f32 %v1018, %v1034
        %v1037 = vxor.u32 %v1012, 2147483648
        %v1038 = vmul.f32 %v1037, 1.442695
        %v1039 = vpow.pop %v1038
        %v1040 = vadd.f32 %v1039, 1.0
        %v1041 = vrcp.pop %v1040
        %v1042 = vmul.f32 1.0, %v1041
        %v1043 = vtanh.pop %v1012
        %v1044 = vmul.f32 %v1042, %v892
        %1046 = vrot.lane.b32.xlu0 %v1043, 64
        %v1047 = vpop.permute.xlu0 %1046
        %v1049 = vmul.f32 %v1042, %v1047
        %1051 = vrot.lane.b32.xlu0 %v1049, 32
        %v1052 = vpop.permute.xlu0 %1051
        %v1054 = vadd.f32 %v1044, %v1052
        %v1055 = vtanh.pop %v1054
        %1057 = vrot.lane.b32.xlu0 %v1055, 64
        %v1058 = vpop.permute.xlu0 %1057
        %v1060 = vmul.f32 %v1042, %v1058
        %v1061 = vpack.c.bf16 %v1036, %v1036
        %v1063 = vunpack.c.l.b16 %v1061
        %v1064 = vpack.c.b16 %v1063, %v1063
        %1065 = vrot.lane.b32.xlu0 %v1064, 32
        %v1066 = vpop.permute.xlu0 %1065
        %s1068 = scalar_lea.vmem %s361, 8 [#allocation15]
        %1069 = vst.msk [vmem:[%s1068] sm:$0xf] %vm744, %v1066
        %v1070 = vpack.c.bf16 %v1060, %v1060
        %v1072 = vunpack.c.l.b16 %v1070
        %v1073 = vpack.c.b16 %v1072, %v1072
        %1074 = vrot.lane.b32.xlu0 %v1073, 32
        %v1075 = vpop.permute.xlu0 %1074
        %s1077 = scalar_lea.vmem %s368, 4 [#allocation16]
        %1078 = vst.msk [vmem:[%s1077] sm:$0xf] %vm744, %v1075
        %1079 = vrot.lane.b32.xlu0 %v1061, 32
        %v1080 = vpop.permute.xlu0 %1079
        %v1082 = vsel %vm576, %v1080, 0
        %1084 = vmatprep.subr.bf16.mxu0 0
        %1085 = vmatpush1.bf16.msra.mxu0 %v572
        %1086 = vmatprep.subr.bf16.mxu0 0
        %1087 = vmatpush1.bf16.msra.mxu0 %v573
        %1088 = vmatprep.subr.bf16.mxu0 0
        %1089 = vmatpush1.bf16.msra.mxu0 0
        %1090 = vmatprep.subr.bf16.mxu0 0
        %1091 = vmatpush1.bf16.msra.mxu0 0
        %1092 = vmatprep.subr.bf16.mxu0 0
        %1093 = vmatpush1.bf16.msra.mxu0 0
        %1094 = vmatprep.subr.bf16.mxu0 0
        %1095 = vmatpush1.bf16.msra.mxu0 0
        %1096 = vmatprep.subr.bf16.mxu0 0
        %1097 = vmatpush1.bf16.msra.mxu0 0
        %1098 = vmatprep.subr.bf16.mxu0 0
        %1099 = vmatpush1.bf16.msra.mxu0 0
        %1100 = vmatprep.subr.bf16.mxu0 0
        %1101 = vmatpush1.bf16.msra.mxu0 0
        %1102 = vmatprep.subr.bf16.mxu0 0
        %1103 = vmatpush1.bf16.msra.mxu0 0
        %1104 = vmatprep.subr.bf16.mxu0 0
        %1105 = vmatpush1.bf16.msra.mxu0 0
        %1106 = vmatprep.subr.bf16.mxu0 0
        %1107 = vmatpush1.bf16.msra.mxu0 0
        %1108 = vmatprep.subr.bf16.mxu0 0
        %1109 = vmatpush1.bf16.msra.mxu0 0
        %1110 = vmatprep.subr.bf16.mxu0 0
        %1111 = vmatpush1.bf16.msra.mxu0 0
        %1112 = vmatprep.subr.bf16.mxu0 0
        %1113 = vmatpush1.bf16.msra.mxu0 0
        %1114 = vmatprep.subr.bf16.mxu0 0
        %1115 = vmatpush1.bf16.msra.mxu0 0
        %1116 = vmatprep.mubr.bf16.mxu0 0
        %1117 = vmatmul.mubr.bf16.gmra.mrb[0].mxu0 %v1082
        %v1118 = vpop.f32.mrb[0].mxu0
        %v1119 = vadd.f32 0.0, %v1118
        %v1120 = vpop.f32.mrb[0].mxu0
        %v1121 = vpop.f32.mrb[0].mxu0
        %v1122 = vpop.f32.mrb[0].mxu0
        %1123 = vdwg.mxu0
        %1124 = vrot.lane.b32.xlu0 %v1070, 32
        %v1125 = vpop.permute.xlu0 %1124
        %v1127 = vsel %vm576, %v1125, 0
        %1129 = vmatprep.subr.bf16.mxu0 0
        %1130 = vmatpush1.bf16.msra.mxu0 %v629
        %1131 = vmatprep.subr.bf16.mxu0 0
        %1132 = vmatpush1.bf16.msra.mxu0 %v630
        %1133 = vmatprep.subr.bf16.mxu0 0
        %1134 = vmatpush1.bf16.msra.mxu0 0
        %1135 = vmatprep.subr.bf16.mxu0 0
        %1136 = vmatpush1.bf16.msra.mxu0 0
        %1137 = vmatprep.subr.bf16.mxu0 0
        %1138 = vmatpush1.bf16.msra.mxu0 0
        %1139 = vmatprep.subr.bf16.mxu0 0
        %1140 = vmatpush1.bf16.msra.mxu0 0
        %1141 = vmatprep.subr.bf16.mxu0 0
        %1142 = vmatpush1.bf16.msra.mxu0 0
        %1143 = vmatprep.subr.bf16.mxu0 0
        %1144 = vmatpush1.bf16.msra.mxu0 0
        %1145 = vmatprep.subr.bf16.mxu0 0
        %1146 = vmatpush1.bf16.msra.mxu0 0
        %1147 = vmatprep.subr.bf16.mxu0 0
        %1148 = vmatpush1.bf16.msra.mxu0 0
        %1149 = vmatprep.subr.bf16.mxu0 0
        %1150 = vmatpush1.bf16.msra.mxu0 0
        %1151 = vmatprep.subr.bf16.mxu0 0
        %1152 = vmatpush1.bf16.msra.mxu0 0
        %1153 = vmatprep.subr.bf16.mxu0 0
        %1154 = vmatpush1.bf16.msra.mxu0 0
        %1155 = vmatprep.subr.bf16.mxu0 0
        %1156 = vmatpush1.bf16.msra.mxu0 0
        %1157 = vmatprep.subr.bf16.mxu0 0
        %1158 = vmatpush1.bf16.msra.mxu0 0
        %1159 = vmatprep.subr.bf16.mxu0 0
        %1160 = vmatpush1.bf16.msra.mxu0 0
        %1161 = vmatprep.mubr.bf16.mxu0 0
        %1162 = vmatmul.mubr.bf16.gmra.mrb[0].mxu0 %v1127
        %v1163 = vpop.f32.mrb[0].mxu0
        %v1164 = vadd.f32 0.0, %v1163
        %v1165 = vpop.f32.mrb[0].mxu0
        %v1166 = vpop.f32.mrb[0].mxu0
        %v1167 = vpop.f32.mrb[0].mxu0
        %1168 = vdwg.mxu0
        %s1169 = scalar_lea.vmem [#allocation2], 24
        %v1170 = vld [vmem:[%s1169] sm:$0xff]
        %v1171 = vadd.f32 %v1170, %v1119
        %v1172 = vld [vmem:[#allocation3] sm:$0xff]
        %v1173 = vadd.f32 %v1172, %v1164
        %v1174 = vxor.u32 %v1171, 2147483648
        %v1175 = vmul.f32 %v1174, 1.442695
        %v1176 = vpow.pop %v1175
        %v1177 = vadd.f32 %v1176, 1.0
        %v1178 = vrcp.pop %v1177
        %v1179 = vmul.f32 1.0, %v1178
        %v1180 = vtanh.pop %v1171
        %v1181 = vmul.f32 %v1179, %v1030
        %1183 = vrot.lane.b32.xlu0 %v1180, 64
        %v1184 = vpop.permute.xlu0 %1183
        %v1186 = vmul.f32 %v1179, %v1184
        %1188 = vrot.lane.b32.xlu0 %v1186, 32
        %v1189 = vpop.permute.xlu0 %1188
        %v1191 = vadd.f32 %v1181, %v1189
        %v1192 = vtanh.pop %v1191
        %1194 = vrot.lane.b32.xlu0 %v1192, 64
        %v1195 = vpop.permute.xlu0 %1194
        %v1197 = vmul.f32 %v1179, %v1195
        %v1198 = vxor.u32 %v1173, 2147483648
        %v1199 = vmul.f32 %v1198, 1.442695
        %v1200 = vpow.pop %v1199
        %v1201 = vadd.f32 %v1200, 1.0
        %v1202 = vrcp.pop %v1201
        %v1203 = vmul.f32 1.0, %v1202
        %v1204 = vtanh.pop %v1173
        %v1205 = vmul.f32 %v1203, %v1054
        %1207 = vrot.lane.b32.xlu0 %v1204, 64
        %v1208 = vpop.permute.xlu0 %1207
        %v1210 = vmul.f32 %v1203, %v1208
        %1212 = vrot.lane.b32.xlu0 %v1210, 32
        %v1213 = vpop.permute.xlu0 %1212
        %v1215 = vadd.f32 %v1205, %v1213
        %v1216 = vtanh.pop %v1215
        %1218 = vrot.lane.b32.xlu0 %v1216, 64
        %v1219 = vpop.permute.xlu0 %1218
        %v1221 = vmul.f32 %v1203, %v1219
        %v1222 = vpack.c.bf16 %v1197, %v1197
        %v1224 = vunpack.c.l.b16 %v1222
        %v1225 = vpack.c.b16 %v1224, %v1224
        %1226 = vrot.lane.b32.xlu0 %v1225, 32
        %v1227 = vpop.permute.xlu0 %1226
        %s1229 = scalar_lea.vmem %s361, 12 [#allocation15]
        %1230 = vst.msk [vmem:[%s1229] sm:$0xf] %vm744, %v1227
        %v1231 = vpack.c.bf16 %v1221, %v1221
        %v1233 = vunpack.c.l.b16 %v1231
        %v1234 = vpack.c.b16 %v1233, %v1233
        %1235 = vrot.lane.b32.xlu0 %v1234, 32
        %v1236 = vpop.permute.xlu0 %1235
        %1238 = vst.msk [vmem:[%s368] sm:$0xf] %vm744, %v1236
        %1240 = vrot.lane.b32.xlu0 %v1197, 32
        %v1241 = vpop.permute.xlu0 %1240
        %1243 = vst.msk [vmem:[#allocation4] sm:$0xff] %vm576, %v1241
        %1245 = vrot.lane.b32.xlu0 %v1221, 32
        %v1246 = vpop.permute.xlu0 %1245
        %1248 = vst.msk [vmem:[%s558] sm:$0xff] %vm576, %v1246
        %1250 = vrot.lane.b32.xlu0 %v1191, 96
        %v1251 = vpop.permute.xlu0 %1250
        %1253 = vst.msk [vmem:[#allocation5] sm:$0xff] %vm576, %v1251
        %1255 = vrot.lane.b32.xlu0 %v1215, 96
        %v1256 = vpop.permute.xlu0 %1255
        %1258 = vst.msk [vmem:[%s561] sm:$0xff] %vm576, %v1256
        %s1259 = sand.u32 %s156, 1
        %s1260 = scalar_lea.sflag [#allocation8], %s1259
        %s1261 = sand.u32 %s156, 1
        %s1262 = smul.addr %s1261, 16
        %s1263 = scalar_lea.vmem [#allocation15], %s1262
        %s1264 = sand.u32 %s184, 1
        %s1265 = scalar_lea.sflag [#allocation17], %s1264
        %s1266 = sand.u32 %s184, 1
        %s1267 = smul.addr %s1266, 16
        %s1268 = scalar_lea.vmem [#allocation16], %s1267
        // Predicated region
        $region65: #{tpu_custom_call.1} parent=39 // pred_check
          %p1269 = pneg %p166
        $region66: #{tpu_custom_call.1} parent=39 // pred_check_branch
          %1271 = sbr.rel (%p1269) target = $region68
        $region67: #{tpu_custom_call.1} parent=39 // pred_region
          %s1272 = smul.u32 4, %s31
          %s1274 = ssub.s32 256, 256
          %1275 = vsyncadd %s1260, %s1274
          %s1276 = smul.addr %s1272, 64
          %s1277 = scalar_lea.hbm %s5, %s1276
          %s1278 = sshll.u32 %s1263, 4
          %s1279 = int_to_ptr.vmem [resolvable:$true] %s1278
          %1284 = dma.vmem_to_hbm [thread:$0]  %s1279, 256, %s1277, %s1260, 64, 64, 4
        $region68: #{tpu_custom_call.1} parent=39 // pred_fallthru
          _
        // Predicated region
        $region69: #{tpu_custom_call.1} parent=39 // pred_check
          %p1285 = pneg %p194
        $region70: #{tpu_custom_call.1} parent=39 // pred_check_branch
          %1287 = sbr.rel (%p1285) target = $region72
        $region71: #{tpu_custom_call.1} parent=39 // pred_region
          %s1288 = ssub.s32 1, %s31
          %s1289 = smul.u32 4, %s1288
          %s1291 = ssub.s32 256, 256
          %1292 = vsyncadd %s1265, %s1291
          %s1293 = smul.addr %s1289, 64
          %s1294 = scalar_lea.hbm %s6, %s1293
          %s1295 = sshll.u32 %s1268, 4
          %s1296 = int_to_ptr.vmem [resolvable:$true] %s1295
          %1301 = dma.vmem_to_hbm [thread:$0]  %s1296, 256, %s1294, %s1265, 64, 64, 4
        $region72: #{tpu_custom_call.1} parent=39 // pred_fallthru
          _
      $region40: #{tpu_custom_call.1} parent=5 // pred_fallthru
        _
      %p1302 = scmp.le.s32.totalorder 2, %s26
      // Predicated region
      $region73: #{tpu_custom_call.1} parent=5 // pred_check
        %p1303 = pneg %p1302
      $region74: #{tpu_custom_call.1} parent=5 // pred_check_branch
        %1305 = sbr.rel (%p1303) target = $region76
      $region75: #{tpu_custom_call.1} parent=5 // pred_region
        %s1306 = ssub.s32 %s26, 2
        // Predicated region
        $region77: #{tpu_custom_call.1} parent=75 // pred_check
          %p1307 = pneg %p172
        $region78: #{tpu_custom_call.1} parent=75 // pred_check_branch
          %1309 = sbr.rel (%p1307) target = $region80
        $region79: #{tpu_custom_call.1} parent=75 // pred_region
          %s1310 = sand.u32 %s157, 1
          %s1311 = scalar_lea.sflag [#allocation8], %s1310
          %s1312 = sand.u32 %s157, 1
          %s1313 = smul.addr %s1312, 16
          %s1314 = scalar_lea.vmem [#allocation15], %s1313
          %1315 = dma.done %s1311, 256
        $region80: #{tpu_custom_call.1} parent=75 // pred_fallthru
          _
        // Predicated region
        $region81: #{tpu_custom_call.1} parent=75 // pred_check
          %p1316 = pneg %p200
        $region82: #{tpu_custom_call.1} parent=75 // pred_check_branch
          %1318 = sbr.rel (%p1316) target = $region84
        $region83: #{tpu_custom_call.1} parent=75 // pred_region
          %s1319 = sand.u32 %s185, 1
          %s1320 = scalar_lea.sflag [#allocation17], %s1319
          %s1321 = sand.u32 %s185, 1
          %s1322 = smul.addr %s1321, 16
          %s1323 = scalar_lea.vmem [#allocation16], %s1322
          %1324 = dma.done %s1320, 256
        $region84: #{tpu_custom_call.1} parent=75 // pred_fallthru
          _
      $region76: #{tpu_custom_call.1} parent=5 // pred_fallthru
        _
    $region6: #{tpu_custom_call.1} parent=1 // loop_footer
      %s30 = sadd.s32 1, %s26
    $region7: #{tpu_custom_call.1} parent=1 // loop_footer_branch
      %25 = sbr.rel target = $region3
    $region8: #{tpu_custom_call.1} parent=1 // loop_exit
      _
    %1325 = vsyncpa [#allocation7], 1
    %s1326 = scalar_lea.sflag [#allocation7], 1
    %1327 = vsyncpa %s1326, 1
    %1328 = vsyncpa [#allocation10], 1
    %s1329 = scalar_lea.sflag [#allocation10], 1
    %1330 = vsyncpa %s1329, 1
    %1331 = vsyncpa [#allocation13], 1
    %1332 = vsyncpa [#allocation8], 1
    %s1333 = scalar_lea.sflag [#allocation8], 1
    %1334 = vsyncpa %s1333, 1
    %1335 = vsyncpa [#allocation17], 1
    %s1336 = scalar_lea.sflag [#allocation17], 1
    %1337 = vsyncpa %s1336, 1

</llo_original>
